<compile_context>
chip_gen: v5e
topology: v5e:2x2
jax: 0.10.0
libtpu: 0.0.40
codegen_flags: <defaults>
</compile_context>

<pallas_src>
import jax
import jax.numpy as jnp
from jax.experimental import pallas as pl
from jax.experimental.pallas import tpu as pltpu

NEG_SLOPE = 0.2
OUT_LANES = 128  # lane-dense packed output slab width


def _leaky_relu(x):
    return jnp.where(x > 0, x, NEG_SLOPE * x)


def cd_forward_kernel(
    x_ref,
    w1_ref, b1_ref,
    w2_ref, b2_ref,
    w3_ref, b3_ref,
    w4_ref, b4_ref,
    w5_ref, b5_ref,
    wc1_ref, bc1_ref,
    wd_pad_ref, wc2_pad_ref, b_slab_ref,
    out_ref,
):
    # main_model: 5 x (spectrally-normalized Linear + LeakyReLU(0.2))
    # Activations ride in bf16 through the MXU; accumulation is f32.
    h = x_ref[...].astype(jnp.bfloat16)
    h = _leaky_relu(
        jnp.dot(h, w1_ref[...], preferred_element_type=jnp.float32) + b1_ref[...]
    ).astype(jnp.bfloat16)
    h = _leaky_relu(
        jnp.dot(h, w2_ref[...], preferred_element_type=jnp.float32) + b2_ref[...]
    ).astype(jnp.bfloat16)
    h = _leaky_relu(
        jnp.dot(h, w3_ref[...], preferred_element_type=jnp.float32) + b3_ref[...]
    ).astype(jnp.bfloat16)
    h = _leaky_relu(
        jnp.dot(h, w4_ref[...], preferred_element_type=jnp.float32) + b4_ref[...]
    ).astype(jnp.bfloat16)
    feats = _leaky_relu(
        jnp.dot(h, w5_ref[...], preferred_element_type=jnp.float32) + b5_ref[...]
    )
    fb = feats.astype(jnp.bfloat16)

    # c_last_layer first Linear(16, 64) + LeakyReLU.
    # TODO(synk): Dropout(0.3) is eval-mode identity; training-mode masking
    # would need pltpu.prng_seed/prng_random_bits + a seed input.
    c = _leaky_relu(
        jnp.dot(fb, wc1_ref[...], preferred_element_type=jnp.float32) + bc1_ref[...]
    ).astype(jnp.bfloat16)

    # Fused, lane-dense head slab: col 0 = critic (d_last_layer),
    # cols 1..label_num = class logits (c_last_layer second Linear).
    out_ref[...] = (
        jnp.dot(fb, wd_pad_ref[...], preferred_element_type=jnp.float32)
        + jnp.dot(c, wc2_pad_ref[...], preferred_element_type=jnp.float32)
        + b_slab_ref[...]
    )


# ----------------------------------------------------------------------------
# Parameter construction (plain-JAX glue; mirrors the PyTorch module).
# ----------------------------------------------------------------------------

def spectral_normalize(w_out_in, key, n_iter=30, eps=1e-12):
    """Divide weight (PyTorch [out, in] layout) by its largest singular value,
    estimated with power iteration (deterministic u init)."""
    out_dim, in_dim = w_out_in.shape
    u = jax.random.normal(key, (out_dim,), dtype=jnp.float32)
    u = u / (jnp.linalg.norm(u) + eps)
    v = jnp.zeros((in_dim,), dtype=jnp.float32)

    def body(_, carry):
        u, v = carry
        v = w_out_in.T @ u
        v = v / (jnp.linalg.norm(v) + eps)
        u = w_out_in @ v
        u = u / (jnp.linalg.norm(u) + eps)
        return u, v

    u, v = jax.lax.fori_loop(0, n_iter, body, (u, v))
    sigma = u @ (w_out_in @ v)
    return w_out_in / sigma


def init_linear(key, in_dim, out_dim):
    """Deterministic PyTorch-style uniform(-1/sqrt(fan_in), 1/sqrt(fan_in)) init."""
    kw, kb = jax.random.split(key)
    bound = 1.0 / jnp.sqrt(jnp.asarray(in_dim, jnp.float32))
    w = jax.random.uniform(kw, (out_dim, in_dim), jnp.float32, -bound, bound)
    b = jax.random.uniform(kb, (out_dim,), jnp.float32, -bound, bound)
    return w, b


def make_params(in_features, label_num, key):
    dims_main = [(in_features, 1024), (1024, 512), (512, 128), (128, 32), (32, 16)]
    keys = jax.random.split(key, 16)
    params = []
    ki = 0
    for (din, dout) in dims_main:  # main_model (spectral-normalized)
        w, b = init_linear(keys[ki], din, dout); ki += 1
        w = spectral_normalize(w, keys[ki]); ki += 1
        params.append((w.T, b.reshape(1, dout)))  # store [in, out], bias [1, out]
    w, b = init_linear(keys[ki], 16, 1); ki += 1          # d_last_layer
    params.append((w.T, b.reshape(1, 1)))
    w, b = init_linear(keys[ki], 16, 64); ki += 1         # c_last_layer[0]
    params.append((w.T, b.reshape(1, 64)))
    w, b = init_linear(keys[ki], 64, label_num); ki += 1  # c_last_layer[3]
    params.append((w.T, b.reshape(1, label_num)))
    return params


# ----------------------------------------------------------------------------
# Kernel-facing packing + wrapper.
# ----------------------------------------------------------------------------

def _pack_for_kernel(params, label_num):
    """bf16 weights, f32 biases, lane-dense padded head weights."""
    (w1, b1), (w2, b2), (w3, b3), (w4, b4), (w5, b5), (wd, bd), (wc1, bc1), (wc2, bc2) = params
    flat = []
    for w, b in [(w1, b1), (w2, b2), (w3, b3), (w4, b4), (w5, b5)]:
        flat.extend([w.astype(jnp.bfloat16), b])
    flat.extend([wc1.astype(jnp.bfloat16), bc1])

    # Pad head weights so the kernel writes one lane-dense [*, 128] slab:
    #   slab[:, 0]              = features @ wd + bd          (critic score)
    #   slab[:, 1:1+label_num]  = c_pre    @ wc2 + bc2        (class logits)
    wd_pad = jnp.zeros((16, OUT_LANES), jnp.float32).at[:, 0:1].set(wd)
    wc2_pad = jnp.zeros((64, OUT_LANES), jnp.float32).at[:, 1:1 + label_num].set(wc2)
    b_slab = (
        jnp.zeros((1, OUT_LANES), jnp.float32)
        .at[:, 0:1].set(bd)
        .at[:, 1:1 + label_num].set(bc2)
    )
    flat.extend([wd_pad.astype(jnp.bfloat16), wc2_pad.astype(jnp.bfloat16), b_slab])
    return flat


def cd_model_forward(x, params, *, tm=128):
    """Returns (critic_score [B,1], class_logits [B,label_num])."""
    batch, in_features = x.shape
    label_num = params[-1][0].shape[1]
    assert label_num <= OUT_LANES - 1

    flat_params = _pack_for_kernel(params, label_num)

    # Batch tile: 128 saturates v5e's MXU and is a good default on v6e/v7x
    # (bump tm=256 for large batches on v6e/v7x); shrink for tiny batches.
    tm_eff = min(tm, ((batch + 7) // 8) * 8)
    padded = ((batch + tm_eff - 1) // tm_eff) * tm_eff
    if padded != batch:
        x = jnp.pad(x, ((0, padded - batch), (0, 0)))
    grid = (padded // tm_eff,)

    # x / output tiles move with the grid; every weight uses a constant
    # index_map so it is DMA'd once and stays VMEM-resident across steps.
    in_specs = [pl.BlockSpec((tm_eff, in_features), lambda i: (i, 0))]
    in_specs += [pl.BlockSpec(p.shape, lambda i: (0, 0)) for p in flat_params]
    out_spec = pl.BlockSpec((tm_eff, OUT_LANES), lambda i: (i, 0))

    # Advisory cost estimate so XLA can overlap this short mem-bound call.
    layer_dims = [(in_features, 1024), (1024, 512), (512, 128), (128, 32),
                  (32, 16), (16, 64), (16, OUT_LANES), (64, OUT_LANES)]
    flops = 2 * padded * sum(d * o for d, o in layer_dims)
    param_bytes = sum(int(p.size) * p.dtype.itemsize for p in flat_params)
    bytes_accessed = param_bytes + x.size * 4 + padded * OUT_LANES * 4

    slab = pl.pallas_call(
        cd_forward_kernel,
        out_shape=jax.ShapeDtypeStruct((padded, OUT_LANES), jnp.float32),
        grid=grid,
        in_specs=in_specs,
        out_specs=out_spec,
        compiler_params=pltpu.CompilerParams(
            dimension_semantics=("parallel",),
            vmem_limit_bytes=32 * 1024 * 1024,
        ),
        cost_estimate=pl.CostEstimate(
            flops=flops, transcendentals=0, bytes_accessed=bytes_accessed
        ),
    )(x, *flat_params)

    # TODO(synk): if called repeatedly per GAN step with tiny batches, pin the
    # bf16 weights across calls (cross-call prefetch / larger in-call batch grid)
    # to amortize the ~1.3 MB weight DMA that dominates end-to-end latency.
    critic_score = slab[:batch, 0:1]
    class_logits = slab[:batch, 1:1 + label_num]
    return critic_score, class_logits


def cd_model_reference(x, params):
    """Plain-JAX f32 reference (eval-mode dropout) for validation."""
    (w1, b1), (w2, b2), (w3, b3), (w4, b4), (w5, b5), (wd, bd), (wc1, bc1), (wc2, bc2) = params
    h = x
    for w, b in [(w1, b1), (w2, b2), (w3, b3), (w4, b4), (w5, b5)]:
        h = _leaky_relu(h @ w + b)
    critic = h @ wd + bd
    c = _leaky_relu(h @ wc1 + bc1)
    logits = c @ wc2 + bc2
    return critic, logits


if __name__ == "__main__":
    in_features = 32
    label_num = 8
    batch = 8

    key = jax.random.PRNGKey(0)
    k_params, k_x = jax.random.split(key)

    params = make_params(in_features, label_num, k_params)
    x = jax.random.normal(k_x, (batch, in_features), dtype=jnp.float32)

    critic_score, class_logits = cd_model_forward(x, params)
    jax.block_until_ready((critic_score, class_logits))

    assert critic_score.shape == (batch, 1)
    assert class_logits.shape == (batch, label_num)

    # Loose check against the f32 reference (bf16 weights => ~1e-2 rel. error).
    ref_critic, ref_logits = cd_model_reference(x, params)
    assert jnp.allclose(critic_score, ref_critic, atol=5e-2, rtol=5e-2)
    assert jnp.allclose(class_logits, ref_logits, atol=5e-2, rtol=5e-2)

    print("KERNEL_OK")
</pallas_src>

<mosaic_0001>
module attributes {stable_mosaic.version = 11 : i64} {
  func.func @cd_forward_kernel(%arg0: i32, %arg1: memref<8x32xf32, #tpu.memory_space<vmem>>, %arg2: memref<32x1024xbf16, #tpu.memory_space<vmem>>, %arg3: memref<1x1024xf32, #tpu.memory_space<vmem>>, %arg4: memref<1024x512xbf16, #tpu.memory_space<vmem>>, %arg5: memref<1x512xf32, #tpu.memory_space<vmem>>, %arg6: memref<512x128xbf16, #tpu.memory_space<vmem>>, %arg7: memref<1x128xf32, #tpu.memory_space<vmem>>, %arg8: memref<128x32xbf16, #tpu.memory_space<vmem>>, %arg9: memref<1x32xf32, #tpu.memory_space<vmem>>, %arg10: memref<32x16xbf16, #tpu.memory_space<vmem>>, %arg11: memref<1x16xf32, #tpu.memory_space<vmem>>, %arg12: memref<16x64xbf16, #tpu.memory_space<vmem>>, %arg13: memref<1x64xf32, #tpu.memory_space<vmem>>, %arg14: memref<16x128xbf16, #tpu.memory_space<vmem>>, %arg15: memref<64x128xbf16, #tpu.memory_space<vmem>>, %arg16: memref<1x128xf32, #tpu.memory_space<vmem>>, %arg17: memref<8x128xf32, #tpu.memory_space<vmem>>) attributes {dimension_semantics = [#tpu.dimension_semantics<parallel>], iteration_bounds = array<i64: 1>, scalar_prefetch = 0 : i64, scratch_operands = 0 : i64, tpu.core_type = #tpu.core_type<tc>, window_params = [{transform_indices = @transform_0, window_bounds = array<i64: 8, 32>}, {pipeline_mode = #tpu.pipeline_mode<synchronous>, transform_indices = @transform_1, window_bounds = array<i64: 32, 1024>}, {pipeline_mode = #tpu.pipeline_mode<synchronous>, transform_indices = @transform_2, window_bounds = array<i64: 1, 1024>}, {pipeline_mode = #tpu.pipeline_mode<synchronous>, transform_indices = @transform_3, window_bounds = array<i64: 1024, 512>}, {pipeline_mode = #tpu.pipeline_mode<synchronous>, transform_indices = @transform_4, window_bounds = array<i64: 1, 512>}, {pipeline_mode = #tpu.pipeline_mode<synchronous>, transform_indices = @transform_5, window_bounds = array<i64: 512, 128>}, {pipeline_mode = #tpu.pipeline_mode<synchronous>, transform_indices = @transform_6, window_bounds = array<i64: 1, 128>}, {pipeline_mode = #tpu.pipeline_mode<synchronous>, transform_indices = @transform_7, window_bounds = array<i64: 128, 32>}, {pipeline_mode = #tpu.pipeline_mode<synchronous>, transform_indices = @transform_8, window_bounds = array<i64: 1, 32>}, {pipeline_mode = #tpu.pipeline_mode<synchronous>, transform_indices = @transform_9, window_bounds = array<i64: 32, 16>}, {pipeline_mode = #tpu.pipeline_mode<synchronous>, transform_indices = @transform_10, window_bounds = array<i64: 1, 16>}, {pipeline_mode = #tpu.pipeline_mode<synchronous>, transform_indices = @transform_11, window_bounds = array<i64: 16, 64>}, {pipeline_mode = #tpu.pipeline_mode<synchronous>, transform_indices = @transform_12, window_bounds = array<i64: 1, 64>}, {pipeline_mode = #tpu.pipeline_mode<synchronous>, transform_indices = @transform_13, window_bounds = array<i64: 16, 128>}, {pipeline_mode = #tpu.pipeline_mode<synchronous>, transform_indices = @transform_14, window_bounds = array<i64: 64, 128>}, {pipeline_mode = #tpu.pipeline_mode<synchronous>, transform_indices = @transform_15, window_bounds = array<i64: 1, 128>}, {transform_indices = @transform_16, window_bounds = array<i64: 8, 128>}]} {
    %c0 = arith.constant 0 : index
    %c0_0 = arith.constant 0 : index
    %0 = vector.load %arg1[%c0, %c0_0] : memref<8x32xf32, #tpu.memory_space<vmem>>, vector<8x32xf32>
    %1 = arith.truncf %0 : vector<8x32xf32> to vector<8x32xbf16>
    %c0_1 = arith.constant 0 : index
    %c0_2 = arith.constant 0 : index
    %2 = vector.load %arg2[%c0_1, %c0_2] : memref<32x1024xbf16, #tpu.memory_space<vmem>>, vector<32x1024xbf16>
    %cst = arith.constant dense<0.000000e+00> : vector<8x1024xf32>
    %3 = tpu.matmul %1, %2, %cst {dimension_numbers = #tpu.dot_dimension_numbers<[1], [0], [0], [1], [0, 0, 1, 1], [], []>} : vector<8x32xbf16>, vector<32x1024xbf16>, vector<8x1024xf32> -> vector<8x1024xf32>
    %c0_3 = arith.constant 0 : index
    %c0_4 = arith.constant 0 : index
    %4 = vector.load %arg3[%c0_3, %c0_4] : memref<1x1024xf32, #tpu.memory_space<vmem>>, vector<1x1024xf32>
    %5 = vector.broadcast %4 : vector<1x1024xf32> to vector<8x1024xf32>
    %6 = arith.addf %3, %5 : vector<8x1024xf32>
    %cst_5 = arith.constant 0.000000e+00 : f32
    %7 = vector.broadcast %cst_5 : f32 to vector<8x1024xf32>
    %8 = arith.cmpf ogt, %6, %7 : vector<8x1024xf32>
    %cst_6 = arith.constant 2.000000e-01 : f32
    %9 = vector.broadcast %cst_6 : f32 to vector<8x1024xf32>
    %10 = arith.mulf %9, %6 : vector<8x1024xf32>
    %11 = arith.select %8, %6, %10 : vector<8x1024xi1>, vector<8x1024xf32>
    %12 = arith.truncf %11 : vector<8x1024xf32> to vector<8x1024xbf16>
    %c0_7 = arith.constant 0 : index
    %c0_8 = arith.constant 0 : index
    %13 = vector.load %arg4[%c0_7, %c0_8] : memref<1024x512xbf16, #tpu.memory_space<vmem>>, vector<1024x512xbf16>
    %cst_9 = arith.constant dense<0.000000e+00> : vector<8x512xf32>
    %14 = tpu.matmul %12, %13, %cst_9 {dimension_numbers = #tpu.dot_dimension_numbers<[1], [0], [0], [1], [0, 0, 1, 1], [], []>} : vector<8x1024xbf16>, vector<1024x512xbf16>, vector<8x512xf32> -> vector<8x512xf32>
    %c0_10 = arith.constant 0 : index
    %c0_11 = arith.constant 0 : index
    %15 = vector.load %arg5[%c0_10, %c0_11] : memref<1x512xf32, #tpu.memory_space<vmem>>, vector<1x512xf32>
    %16 = vector.broadcast %15 : vector<1x512xf32> to vector<8x512xf32>
    %17 = arith.addf %14, %16 : vector<8x512xf32>
    %cst_12 = arith.constant 0.000000e+00 : f32
    %18 = vector.broadcast %cst_12 : f32 to vector<8x512xf32>
    %19 = arith.cmpf ogt, %17, %18 : vector<8x512xf32>
    %cst_13 = arith.constant 2.000000e-01 : f32
    %20 = vector.broadcast %cst_13 : f32 to vector<8x512xf32>
    %21 = arith.mulf %20, %17 : vector<8x512xf32>
    %22 = arith.select %19, %17, %21 : vector<8x512xi1>, vector<8x512xf32>
    %23 = arith.truncf %22 : vector<8x512xf32> to vector<8x512xbf16>
    %c0_14 = arith.constant 0 : index
    %c0_15 = arith.constant 0 : index
    %24 = vector.load %arg6[%c0_14, %c0_15] : memref<512x128xbf16, #tpu.memory_space<vmem>>, vector<512x128xbf16>
    %cst_16 = arith.constant dense<0.000000e+00> : vector<8x128xf32>
    %25 = tpu.matmul %23, %24, %cst_16 {dimension_numbers = #tpu.dot_dimension_numbers<[1], [0], [0], [1], [0, 0, 1, 1], [], []>} : vector<8x512xbf16>, vector<512x128xbf16>, vector<8x128xf32> -> vector<8x128xf32>
    %c0_17 = arith.constant 0 : index
    %c0_18 = arith.constant 0 : index
    %26 = vector.load %arg7[%c0_17, %c0_18] : memref<1x128xf32, #tpu.memory_space<vmem>>, vector<1x128xf32>
    %27 = vector.broadcast %26 : vector<1x128xf32> to vector<8x128xf32>
    %28 = arith.addf %25, %27 : vector<8x128xf32>
    %cst_19 = arith.constant 0.000000e+00 : f32
    %29 = vector.broadcast %cst_19 : f32 to vector<8x128xf32>
    %30 = arith.cmpf ogt, %28, %29 : vector<8x128xf32>
    %cst_20 = arith.constant 2.000000e-01 : f32
    %31 = vector.broadcast %cst_20 : f32 to vector<8x128xf32>
    %32 = arith.mulf %31, %28 : vector<8x128xf32>
    %33 = arith.select %30, %28, %32 : vector<8x128xi1>, vector<8x128xf32>
    %34 = arith.truncf %33 : vector<8x128xf32> to vector<8x128xbf16>
    %c0_21 = arith.constant 0 : index
    %c0_22 = arith.constant 0 : index
    %35 = vector.load %arg8[%c0_21, %c0_22] : memref<128x32xbf16, #tpu.memory_space<vmem>>, vector<128x32xbf16>
    %cst_23 = arith.constant dense<0.000000e+00> : vector<8x32xf32>
    %36 = tpu.matmul %34, %35, %cst_23 {dimension_numbers = #tpu.dot_dimension_numbers<[1], [0], [0], [1], [0, 0, 1, 1], [], []>} : vector<8x128xbf16>, vector<128x32xbf16>, vector<8x32xf32> -> vector<8x32xf32>
    %c0_24 = arith.constant 0 : index
    %c0_25 = arith.constant 0 : index
    %37 = vector.load %arg9[%c0_24, %c0_25] : memref<1x32xf32, #tpu.memory_space<vmem>>, vector<1x32xf32>
    %38 = vector.broadcast %37 : vector<1x32xf32> to vector<8x32xf32>
    %39 = arith.addf %36, %38 : vector<8x32xf32>
    %cst_26 = arith.constant 0.000000e+00 : f32
    %40 = vector.broadcast %cst_26 : f32 to vector<8x32xf32>
    %41 = arith.cmpf ogt, %39, %40 : vector<8x32xf32>
    %cst_27 = arith.constant 2.000000e-01 : f32
    %42 = vector.broadcast %cst_27 : f32 to vector<8x32xf32>
    %43 = arith.mulf %42, %39 : vector<8x32xf32>
    %44 = arith.select %41, %39, %43 : vector<8x32xi1>, vector<8x32xf32>
    %45 = arith.truncf %44 : vector<8x32xf32> to vector<8x32xbf16>
    %c0_28 = arith.constant 0 : index
    %c0_29 = arith.constant 0 : index
    %46 = vector.load %arg10[%c0_28, %c0_29] : memref<32x16xbf16, #tpu.memory_space<vmem>>, vector<32x16xbf16>
    %cst_30 = arith.constant dense<0.000000e+00> : vector<8x16xf32>
    %47 = tpu.matmul %45, %46, %cst_30 {dimension_numbers = #tpu.dot_dimension_numbers<[1], [0], [0], [1], [0, 0, 1, 1], [], []>} : vector<8x32xbf16>, vector<32x16xbf16>, vector<8x16xf32> -> vector<8x16xf32>
    %c0_31 = arith.constant 0 : index
    %c0_32 = arith.constant 0 : index
    %48 = vector.load %arg11[%c0_31, %c0_32] : memref<1x16xf32, #tpu.memory_space<vmem>>, vector<1x16xf32>
    %49 = vector.broadcast %48 : vector<1x16xf32> to vector<8x16xf32>
    %50 = arith.addf %47, %49 : vector<8x16xf32>
    %cst_33 = arith.constant 0.000000e+00 : f32
    %51 = vector.broadcast %cst_33 : f32 to vector<8x16xf32>
    %52 = arith.cmpf ogt, %50, %51 : vector<8x16xf32>
    %cst_34 = arith.constant 2.000000e-01 : f32
    %53 = vector.broadcast %cst_34 : f32 to vector<8x16xf32>
    %54 = arith.mulf %53, %50 : vector<8x16xf32>
    %55 = arith.select %52, %50, %54 : vector<8x16xi1>, vector<8x16xf32>
    %56 = arith.truncf %55 : vector<8x16xf32> to vector<8x16xbf16>
    %c0_35 = arith.constant 0 : index
    %c0_36 = arith.constant 0 : index
    %57 = vector.load %arg12[%c0_35, %c0_36] : memref<16x64xbf16, #tpu.memory_space<vmem>>, vector<16x64xbf16>
    %cst_37 = arith.constant dense<0.000000e+00> : vector<8x64xf32>
    %58 = tpu.matmul %56, %57, %cst_37 {dimension_numbers = #tpu.dot_dimension_numbers<[1], [0], [0], [1], [0, 0, 1, 1], [], []>} : vector<8x16xbf16>, vector<16x64xbf16>, vector<8x64xf32> -> vector<8x64xf32>
    %c0_38 = arith.constant 0 : index
    %c0_39 = arith.constant 0 : index
    %59 = vector.load %arg13[%c0_38, %c0_39] : memref<1x64xf32, #tpu.memory_space<vmem>>, vector<1x64xf32>
    %60 = vector.broadcast %59 : vector<1x64xf32> to vector<8x64xf32>
    %61 = arith.addf %58, %60 : vector<8x64xf32>
    %cst_40 = arith.constant 0.000000e+00 : f32
    %62 = vector.broadcast %cst_40 : f32 to vector<8x64xf32>
    %63 = arith.cmpf ogt, %61, %62 : vector<8x64xf32>
    %cst_41 = arith.constant 2.000000e-01 : f32
    %64 = vector.broadcast %cst_41 : f32 to vector<8x64xf32>
    %65 = arith.mulf %64, %61 : vector<8x64xf32>
    %66 = arith.select %63, %61, %65 : vector<8x64xi1>, vector<8x64xf32>
    %67 = arith.truncf %66 : vector<8x64xf32> to vector<8x64xbf16>
    %c0_42 = arith.constant 0 : index
    %c0_43 = arith.constant 0 : index
    %68 = vector.load %arg14[%c0_42, %c0_43] : memref<16x128xbf16, #tpu.memory_space<vmem>>, vector<16x128xbf16>
    %cst_44 = arith.constant dense<0.000000e+00> : vector<8x128xf32>
    %69 = tpu.matmul %56, %68, %cst_44 {dimension_numbers = #tpu.dot_dimension_numbers<[1], [0], [0], [1], [0, 0, 1, 1], [], []>} : vector<8x16xbf16>, vector<16x128xbf16>, vector<8x128xf32> -> vector<8x128xf32>
    %c0_45 = arith.constant 0 : index
    %c0_46 = arith.constant 0 : index
    %70 = vector.load %arg15[%c0_45, %c0_46] : memref<64x128xbf16, #tpu.memory_space<vmem>>, vector<64x128xbf16>
    %cst_47 = arith.constant dense<0.000000e+00> : vector<8x128xf32>
    %71 = tpu.matmul %67, %70, %cst_47 {dimension_numbers = #tpu.dot_dimension_numbers<[1], [0], [0], [1], [0, 0, 1, 1], [], []>} : vector<8x64xbf16>, vector<64x128xbf16>, vector<8x128xf32> -> vector<8x128xf32>
    %72 = arith.addf %69, %71 : vector<8x128xf32>
    %c0_48 = arith.constant 0 : index
    %c0_49 = arith.constant 0 : index
    %73 = vector.load %arg16[%c0_48, %c0_49] : memref<1x128xf32, #tpu.memory_space<vmem>>, vector<1x128xf32>
    %74 = vector.broadcast %73 : vector<1x128xf32> to vector<8x128xf32>
    %75 = arith.addf %72, %74 : vector<8x128xf32>
    %c0_50 = arith.constant 0 : index
    %c0_51 = arith.constant 0 : index
    %76 = vector.load %arg17[%c0_50, %c0_51] : memref<8x128xf32, #tpu.memory_space<vmem>>, vector<8x128xf32>
    tpu.vector_store %arg17[%c0_50, %c0_51], %75 {strides = array<i32>} : memref<8x128xf32, #tpu.memory_space<vmem>>, vector<8x128xf32>,
    return
  }
  func.func @transform_0(%arg0: i32) -> (i32, i32) {
    %c0_i32 = arith.constant 0 : i32
    %c0_i32_0 = arith.constant 0 : i32
    return %arg0, %c0_i32 : i32, i32
  }
  func.func @transform_1(%arg0: i32) -> (i32, i32) {
    %c0_i32 = arith.constant 0 : i32
    %c0_i32_0 = arith.constant 0 : i32
    %c0_i32_1 = arith.constant 0 : i32
    return %c0_i32, %c0_i32_0 : i32, i32
  }
  func.func @transform_2(%arg0: i32) -> (i32, i32) {
    %c0_i32 = arith.constant 0 : i32
    %c0_i32_0 = arith.constant 0 : i32
    %c0_i32_1 = arith.constant 0 : i32
    return %c0_i32, %c0_i32_0 : i32, i32
  }
  func.func @transform_3(%arg0: i32) -> (i32, i32) {
    %c0_i32 = arith.constant 0 : i32
    %c0_i32_0 = arith.constant 0 : i32
    %c0_i32_1 = arith.constant 0 : i32
    return %c0_i32, %c0_i32_0 : i32, i32
  }
  func.func @transform_4(%arg0: i32) -> (i32, i32) {
    %c0_i32 = arith.constant 0 : i32
    %c0_i32_0 = arith.constant 0 : i32
    %c0_i32_1 = arith.constant 0 : i32
    return %c0_i32, %c0_i32_0 : i32, i32
  }
  func.func @transform_5(%arg0: i32) -> (i32, i32) {
    %c0_i32 = arith.constant 0 : i32
    %c0_i32_0 = arith.constant 0 : i32
    %c0_i32_1 = arith.constant 0 : i32
    return %c0_i32, %c0_i32_0 : i32, i32
  }
  func.func @transform_6(%arg0: i32) -> (i32, i32) {
    %c0_i32 = arith.constant 0 : i32
    %c0_i32_0 = arith.constant 0 : i32
    %c0_i32_1 = arith.constant 0 : i32
    return %c0_i32, %c0_i32_0 : i32, i32
  }
  func.func @transform_7(%arg0: i32) -> (i32, i32) {
    %c0_i32 = arith.constant 0 : i32
    %c0_i32_0 = arith.constant 0 : i32
    %c0_i32_1 = arith.constant 0 : i32
    return %c0_i32, %c0_i32_0 : i32, i32
  }
  func.func @transform_8(%arg0: i32) -> (i32, i32) {
    %c0_i32 = arith.constant 0 : i32
    %c0_i32_0 = arith.constant 0 : i32
    %c0_i32_1 = arith.constant 0 : i32
    return %c0_i32, %c0_i32_0 : i32, i32
  }
  func.func @transform_9(%arg0: i32) -> (i32, i32) {
    %c0_i32 = arith.constant 0 : i32
    %c0_i32_0 = arith.constant 0 : i32
    %c0_i32_1 = arith.constant 0 : i32
    return %c0_i32, %c0_i32_0 : i32, i32
  }
  func.func @transform_10(%arg0: i32) -> (i32, i32) {
    %c0_i32 = arith.constant 0 : i32
    %c0_i32_0 = arith.constant 0 : i32
    %c0_i32_1 = arith.constant 0 : i32
    return %c0_i32, %c0_i32_0 : i32, i32
  }
  func.func @transform_11(%arg0: i32) -> (i32, i32) {
    %c0_i32 = arith.constant 0 : i32
    %c0_i32_0 = arith.constant 0 : i32
    %c0_i32_1 = arith.constant 0 : i32
    return %c0_i32, %c0_i32_0 : i32, i32
  }
  func.func @transform_12(%arg0: i32) -> (i32, i32) {
    %c0_i32 = arith.constant 0 : i32
    %c0_i32_0 = arith.constant 0 : i32
    %c0_i32_1 = arith.constant 0 : i32
    return %c0_i32, %c0_i32_0 : i32, i32
  }
  func.func @transform_13(%arg0: i32) -> (i32, i32) {
    %c0_i32 = arith.constant 0 : i32
    %c0_i32_0 = arith.constant 0 : i32
    %c0_i32_1 = arith.constant 0 : i32
    return %c0_i32, %c0_i32_0 : i32, i32
  }
  func.func @transform_14(%arg0: i32) -> (i32, i32) {
    %c0_i32 = arith.constant 0 : i32
    %c0_i32_0 = arith.constant 0 : i32
    %c0_i32_1 = arith.constant 0 : i32
    return %c0_i32, %c0_i32_0 : i32, i32
  }
  func.func @transform_15(%arg0: i32) -> (i32, i32) {
    %c0_i32 = arith.constant 0 : i32
    %c0_i32_0 = arith.constant 0 : i32
    %c0_i32_1 = arith.constant 0 : i32
    return %c0_i32, %c0_i32_0 : i32, i32
  }
  func.func @transform_16(%arg0: i32) -> (i32, i32) {
    %c0_i32 = arith.constant 0 : i32
    %c0_i32_0 = arith.constant 0 : i32
    return %arg0, %c0_i32 : i32, i32
  }
}

</mosaic_0001>

<llo_original>
// kernel: tpu_custom_call.1
$region0: #{tpu_custom_call.1}
  #allocation0 [shape = 'u32[]', space=smem, size = 0x4, offset = 0x4, fixed_abs, tag = 'smem constant byte address 0x4 - core index']
  #allocation1 [shape = 'u32[72,128]{1,0:T(1,128)}', space=vmem, size = 0x9000, scoped, tag = 'internal scratch']
  %s0 = inlined_call_operand.vmem [shape: f32[8,32], index: 0, kind: input, shape index: {}]
  %s1 = inlined_call_operand.hbm [shape: bf16[32,1024], index: 1, kind: input, shape index: {}]
  %s2 = inlined_call_operand.vmem [shape: f32[1,1024], index: 2, kind: input, shape index: {}]
  %s3 = inlined_call_operand.hbm [shape: bf16[1024,512], index: 3, kind: input, shape index: {}]
  %s4 = inlined_call_operand.vmem [shape: f32[1,512], index: 4, kind: input, shape index: {}]
  %s5 = inlined_call_operand.hbm [shape: bf16[512,128], index: 5, kind: input, shape index: {}]
  %s6 = inlined_call_operand.vmem [shape: f32[1,128], index: 6, kind: input, shape index: {}]
  %s7 = inlined_call_operand.vmem [shape: bf16[128,32], index: 7, kind: input, shape index: {}]
  %s8 = inlined_call_operand.vmem [shape: f32[1,32], index: 8, kind: input, shape index: {}]
  %s9 = inlined_call_operand.vmem [shape: bf16[32,16], index: 9, kind: input, shape index: {}]
  %s10 = inlined_call_operand.vmem [shape: f32[1,16], index: 10, kind: input, shape index: {}]
  %s11 = inlined_call_operand.vmem [shape: bf16[16,64], index: 11, kind: input, shape index: {}]
  %s12 = inlined_call_operand.vmem [shape: f32[1,64], index: 12, kind: input, shape index: {}]
  %s13 = inlined_call_operand.vmem [shape: bf16[16,128], index: 13, kind: input, shape index: {}]
  %s14 = inlined_call_operand.vmem [shape: bf16[64,128], index: 14, kind: input, shape index: {}]
  %s15 = inlined_call_operand.vmem [shape: f32[1,128], index: 15, kind: input, shape index: {}]
  %s16 = inlined_call_operand.hbm [shape: f32[8,128], index: 16, kind: output, shape index: {}]
  %s17 = sld [smem:[#allocation0]]
  $region86: #{tpu_custom_call.1} parent=0
    _
  %s19 = ssub.s32 1, %s17
  %s20 = scalar_select 0, %s19, %s17
  $region1: #{tpu_custom_call.1} parent=0
    #allocation2 [shape = 'u8[65536]{0}', space=vmem, size = 0x10000, scoped, tag = 'input window, operand 1, single buffered']
    #allocation3 [shape = 's32[1]{0}', space=sflag, size = 0x4, scoped, tag = 'scoped memory for tpu_custom_call.1']
    #allocation4 [shape = 's32[1]{0}', space=sflag, size = 0x4, scoped, tag = 'scoped memory for tpu_custom_call.1']
    #allocation5 [shape = 'u8[1048576]{0}', space=vmem, size = 0x100000, scoped, tag = 'input window, operand 3, single buffered']
    #allocation6 [shape = 's32[1]{0}', space=sflag, size = 0x4, scoped, tag = 'scoped memory for tpu_custom_call.1']
    #allocation7 [shape = 'u8[131072]{0}', space=vmem, size = 0x20000, scoped, tag = 'input window, operand 5, single buffered']
    #allocation8 [shape = 'u8[4096]{0}', space=vmem, size = 0x1000, scoped, tag = 'output window, operand 0, single buffered']
    %21 = vsyncpa [#allocation3], 0
    %22 = vsyncpa [#allocation6], 0
    %23 = vsyncpa [#allocation4], 0
    // Predicated region
    $region2: #{tpu_custom_call.1} parent=1 // pred_check
      _
    $region3: #{tpu_custom_call.1} parent=1 // pred_check_branch
      %25 = sbr.rel (0) target = $region5
    $region4: #{tpu_custom_call.1} parent=1 // pred_region
      _
    $region5: #{tpu_custom_call.1} parent=1 // pred_fallthru
      _
    // Predicated region
    $region6: #{tpu_custom_call.1} parent=1 // pred_check
      _
    $region7: #{tpu_custom_call.1} parent=1 // pred_check_branch
      %27 = sbr.rel (0) target = $region9
    $region8: #{tpu_custom_call.1} parent=1 // pred_region
      %29 = vsyncadd [#allocation3], 0
      %s30 = sshll.u32 %s1, 4
      %s31 = int_to_ptr.hbm [resolvable:$true] %s30
      %s32 = sshll.u32 [#allocation2], 4
      %s33 = int_to_ptr.vmem [resolvable:$true] %s32
      %38 = dma.hbm_to_vmem [thread:$0]  %s31, 2048, %s33, [#allocation3], 512, 512, 32
    $region9: #{tpu_custom_call.1} parent=1 // pred_fallthru
      _
    // Predicated region
    $region10: #{tpu_custom_call.1} parent=1 // pred_check
      _
    $region11: #{tpu_custom_call.1} parent=1 // pred_check_branch
      %40 = sbr.rel (0) target = $region13
    $region12: #{tpu_custom_call.1} parent=1 // pred_region
      _
    $region13: #{tpu_custom_call.1} parent=1 // pred_fallthru
      _
    // Predicated region
    $region14: #{tpu_custom_call.1} parent=1 // pred_check
      _
    $region15: #{tpu_custom_call.1} parent=1 // pred_check_branch
      %42 = sbr.rel (0) target = $region17
    $region16: #{tpu_custom_call.1} parent=1 // pred_region
      %44 = vsyncadd [#allocation6], 0
      %s45 = sshll.u32 %s3, 4
      %s46 = int_to_ptr.hbm [resolvable:$true] %s45
      %s47 = sshll.u32 [#allocation5], 4
      %s48 = int_to_ptr.vmem [resolvable:$true] %s47
      %53 = dma.hbm_to_vmem [thread:$0]  %s46, 32768, %s48, [#allocation6], 256, 256, 16
    $region17: #{tpu_custom_call.1} parent=1 // pred_fallthru
      _
    // Predicated region
    $region18: #{tpu_custom_call.1} parent=1 // pred_check
      _
    $region19: #{tpu_custom_call.1} parent=1 // pred_check_branch
      %55 = sbr.rel (0) target = $region21
    $region20: #{tpu_custom_call.1} parent=1 // pred_region
      _
    $region21: #{tpu_custom_call.1} parent=1 // pred_fallthru
      _
    // Predicated region
    $region22: #{tpu_custom_call.1} parent=1 // pred_check
      _
    $region23: #{tpu_custom_call.1} parent=1 // pred_check_branch
      %57 = sbr.rel (0) target = $region25
    $region24: #{tpu_custom_call.1} parent=1 // pred_region
      %59 = vsyncadd [#allocation6], 0
      %s60 = sshll.u32 %s5, 4
      %s61 = int_to_ptr.hbm [resolvable:$true] %s60
      %s62 = sshll.u32 [#allocation7], 4
      %s63 = int_to_ptr.vmem [resolvable:$true] %s62
      %68 = dma.hbm_to_vmem [thread:$0]  %s61, 4096, %s63, [#allocation6], 64, 64, 4
    $region25: #{tpu_custom_call.1} parent=1 // pred_fallthru
      _
    // Predicated region
    $region26: #{tpu_custom_call.1} parent=1 // pred_check
      _
    $region27: #{tpu_custom_call.1} parent=1 // pred_check_branch
      %70 = sbr.rel (0) target = $region29
    $region28: #{tpu_custom_call.1} parent=1 // pred_region
      _
    $region29: #{tpu_custom_call.1} parent=1 // pred_fallthru
      _
    // Predicated region
    $region30: #{tpu_custom_call.1} parent=1 // pred_check
      _
    $region31: #{tpu_custom_call.1} parent=1 // pred_check_branch
      %72 = sbr.rel (0) target = $region33
    $region32: #{tpu_custom_call.1} parent=1 // pred_region
      _
    $region33: #{tpu_custom_call.1} parent=1 // pred_fallthru
      _
    // Predicated region
    $region34: #{tpu_custom_call.1} parent=1 // pred_check
      _
    $region35: #{tpu_custom_call.1} parent=1 // pred_check_branch
      %74 = sbr.rel (0) target = $region37
    $region36: #{tpu_custom_call.1} parent=1 // pred_region
      _
    $region37: #{tpu_custom_call.1} parent=1 // pred_fallthru
      _
    // Predicated region
    $region38: #{tpu_custom_call.1} parent=1 // pred_check
      _
    $region39: #{tpu_custom_call.1} parent=1 // pred_check_branch
      %76 = sbr.rel (0) target = $region41
    $region40: #{tpu_custom_call.1} parent=1 // pred_region
      _
    $region41: #{tpu_custom_call.1} parent=1 // pred_fallthru
      _
    // Predicated region
    $region42: #{tpu_custom_call.1} parent=1 // pred_check
      _
    $region43: #{tpu_custom_call.1} parent=1 // pred_check_branch
      %78 = sbr.rel (0) target = $region45
    $region44: #{tpu_custom_call.1} parent=1 // pred_region
      _
    $region45: #{tpu_custom_call.1} parent=1 // pred_fallthru
      _
    // Predicated region
    $region46: #{tpu_custom_call.1} parent=1 // pred_check
      _
    $region47: #{tpu_custom_call.1} parent=1 // pred_check_branch
      %80 = sbr.rel (0) target = $region49
    $region48: #{tpu_custom_call.1} parent=1 // pred_region
      _
    $region49: #{tpu_custom_call.1} parent=1 // pred_fallthru
      _
    // Predicated region
    $region50: #{tpu_custom_call.1} parent=1 // pred_check
      _
    $region51: #{tpu_custom_call.1} parent=1 // pred_check_branch
      %82 = sbr.rel (0) target = $region53
    $region52: #{tpu_custom_call.1} parent=1 // pred_region
      _
    $region53: #{tpu_custom_call.1} parent=1 // pred_fallthru
      _
    // Predicated region
    $region54: #{tpu_custom_call.1} parent=1 // pred_check
      _
    $region55: #{tpu_custom_call.1} parent=1 // pred_check_branch
      %84 = sbr.rel (0) target = $region57
    $region56: #{tpu_custom_call.1} parent=1 // pred_region
      _
    $region57: #{tpu_custom_call.1} parent=1 // pred_fallthru
      _
    // Predicated region
    $region58: #{tpu_custom_call.1} parent=1 // pred_check
      _
    $region59: #{tpu_custom_call.1} parent=1 // pred_check_branch
      %86 = sbr.rel (0) target = $region61
    $region60: #{tpu_custom_call.1} parent=1 // pred_region
      _
    $region61: #{tpu_custom_call.1} parent=1 // pred_fallthru
      _
    // Predicated region
    $region62: #{tpu_custom_call.1} parent=1 // pred_check
      _
    $region63: #{tpu_custom_call.1} parent=1 // pred_check_branch
      %88 = sbr.rel (0) target = $region65
    $region64: #{tpu_custom_call.1} parent=1 // pred_region
      _
    $region65: #{tpu_custom_call.1} parent=1 // pred_fallthru
      _
    // Predicated region
    $region66: #{tpu_custom_call.1} parent=1 // pred_check
      _
    $region67: #{tpu_custom_call.1} parent=1 // pred_check_branch
      %90 = sbr.rel (0) target = $region69
    $region68: #{tpu_custom_call.1} parent=1 // pred_region
      %92 = dma.done [#allocation3], 2048
    $region69: #{tpu_custom_call.1} parent=1 // pred_fallthru
      _
    // Predicated region
    $region70: #{tpu_custom_call.1} parent=1 // pred_check
      _
    $region71: #{tpu_custom_call.1} parent=1 // pred_check_branch
      %94 = sbr.rel (0) target = $region73
    $region72: #{tpu_custom_call.1} parent=1 // pred_region
      %96 = dma.done [#allocation6], 32768
    $region73: #{tpu_custom_call.1} parent=1 // pred_fallthru
      _
    // Predicated region
    $region74: #{tpu_custom_call.1} parent=1 // pred_check
      _
    $region75: #{tpu_custom_call.1} parent=1 // pred_check_branch
      %98 = sbr.rel (0) target = $region77
    $region76: #{tpu_custom_call.1} parent=1 // pred_region
      %100 = dma.done [#allocation6], 4096
    $region77: #{tpu_custom_call.1} parent=1 // pred_fallthru
      _
    %v102 = vld [vmem:[%s0] sm:$0xff]
    %v103 = vpack.c.bf16 %v102, %v102
    %v104 = vld [vmem:[#allocation2] sm:$0xff]
    %v105 = vld [vmem:[#allocation2 + $0x8] sm:$0xff]
    %v106 = vld [vmem:[#allocation2 + $0x10] sm:$0xff]
    %v107 = vld [vmem:[#allocation2 + $0x18] sm:$0xff]
    %v108 = vld [vmem:[#allocation2 + $0x20] sm:$0xff]
    %v109 = vld [vmem:[#allocation2 + $0x28] sm:$0xff]
    %v110 = vld [vmem:[#allocation2 + $0x30] sm:$0xff]
    %v111 = vld [vmem:[#allocation2 + $0x38] sm:$0xff]
    %v112 = vld [vmem:[#allocation2 + $0x40] sm:$0xff]
    %v113 = vld [vmem:[#allocation2 + $0x48] sm:$0xff]
    %v114 = vld [vmem:[#allocation2 + $0x50] sm:$0xff]
    %v115 = vld [vmem:[#allocation2 + $0x58] sm:$0xff]
    %v116 = vld [vmem:[#allocation2 + $0x60] sm:$0xff]
    %v117 = vld [vmem:[#allocation2 + $0x68] sm:$0xff]
    %v118 = vld [vmem:[#allocation2 + $0x70] sm:$0xff]
    %v119 = vld [vmem:[#allocation2 + $0x78] sm:$0xff]
    %v120 = vld [vmem:[%s2] sm:$0xff]
    %v122 = vperm.slane %v120, 0
    %v123 = vperm.slane %v120, 1
    %v124 = vperm.slane %v120, 2
    %v125 = vperm.slane %v120, 3
    %v126 = vperm.slane %v120, 4
    %v127 = vperm.slane %v120, 5
    %v128 = vperm.slane %v120, 6
    %v129 = vperm.slane %v120, 7
    %v154 = vunpack.c.l.b16 %v104
    %v155 = vunpack.c.h.b16 %v104
    %v156 = vunpack.c.l.b16 %v105
    %v157 = vunpack.c.h.b16 %v105
    %v158 = vunpack.c.l.b16 %v106
    %v159 = vunpack.c.h.b16 %v106
    %v160 = vunpack.c.l.b16 %v107
    %v161 = vunpack.c.h.b16 %v107
    %v162 = vunpack.c.l.b16 %v108
    %v163 = vunpack.c.h.b16 %v108
    %v164 = vunpack.c.l.b16 %v109
    %v165 = vunpack.c.h.b16 %v109
    %v166 = vunpack.c.l.b16 %v110
    %v167 = vunpack.c.h.b16 %v110
    %v168 = vunpack.c.l.b16 %v111
    %v169 = vunpack.c.h.b16 %v111
    %v170 = vunpack.c.l.b16 %v112
    %v171 = vunpack.c.h.b16 %v112
    %v172 = vunpack.c.l.b16 %v113
    %v173 = vunpack.c.h.b16 %v113
    %v174 = vunpack.c.l.b16 %v114
    %v175 = vunpack.c.h.b16 %v114
    %v176 = vunpack.c.l.b16 %v115
    %v177 = vunpack.c.h.b16 %v115
    %v178 = vunpack.c.l.b16 %v116
    %v179 = vunpack.c.h.b16 %v116
    %v180 = vunpack.c.l.b16 %v117
    %v181 = vunpack.c.h.b16 %v117
    %v182 = vunpack.c.l.b16 %v118
    %v183 = vunpack.c.h.b16 %v118
    %v184 = vunpack.c.l.b16 %v119
    %v185 = vunpack.c.h.b16 %v119
    %v186 = vpack.c.b16 %v162, %v154
    %v187 = vpack.c.b16 %v163, %v155
    %v188 = vpack.c.b16 %v164, %v156
    %v189 = vpack.c.b16 %v165, %v157
    %v190 = vpack.c.b16 %v166, %v158
    %v191 = vpack.c.b16 %v167, %v159
    %v192 = vpack.c.b16 %v168, %v160
    %v193 = vpack.c.b16 %v169, %v161
    %v194 = vpack.c.b16 %v178, %v170
    %v195 = vpack.c.b16 %v179, %v171
    %v196 = vpack.c.b16 %v180, %v172
    %v197 = vpack.c.b16 %v181, %v173
    %v198 = vpack.c.b16 %v182, %v174
    %v199 = vpack.c.b16 %v183, %v175
    %v200 = vpack.c.b16 %v184, %v176
    %v201 = vpack.c.b16 %v185, %v177
    %vm218 = vcmask 261120
    %v220 = vsel %vm218, %v103, 0
    %222 = vmatpush.bf16.msra.mxu0 0
    %223 = vmatpush.bf16.msra.mxu0 0
    %224 = vmatpush.bf16.msra.mxu0 0
    %225 = vmatpush.bf16.msra.mxu0 0
    %226 = vmatpush.bf16.msra.mxu0 0
    %227 = vmatpush.bf16.msra.mxu0 0
    %228 = vmatpush.bf16.msra.mxu0 %v194
    %229 = vmatpush.bf16.msra.mxu0 %v186
    %230 = vmatmul.bf16.gmra.mxu0 %v220
    %v231 = vpop.f32.mrf.mxu0
    %v232 = vadd.f32 %v122, %v231
    %v233 = vpop.f32.mrf.mxu0
    %234 = vdwg.mxu0
    %235 = vmatpush.bf16.msra.mxu0 0
    %236 = vmatpush.bf16.msra.mxu0 0
    %237 = vmatpush.bf16.msra.mxu0 0
    %238 = vmatpush.bf16.msra.mxu0 0
    %239 = vmatpush.bf16.msra.mxu0 0
    %240 = vmatpush.bf16.msra.mxu0 0
    %241 = vmatpush.bf16.msra.mxu0 %v195
    %242 = vmatpush.bf16.msra.mxu0 %v187
    %243 = vmatmul.bf16.gmra.mxu0 %v220
    %v244 = vpop.f32.mrf.mxu0
    %v245 = vadd.f32 %v123, %v244
    %v246 = vpop.f32.mrf.mxu0
    %247 = vdwg.mxu0
    %248 = vmatpush.bf16.msra.mxu0 0
    %249 = vmatpush.bf16.msra.mxu0 0
    %250 = vmatpush.bf16.msra.mxu0 0
    %251 = vmatpush.bf16.msra.mxu0 0
    %252 = vmatpush.bf16.msra.mxu0 0
    %253 = vmatpush.bf16.msra.mxu0 0
    %254 = vmatpush.bf16.msra.mxu0 %v196
    %255 = vmatpush.bf16.msra.mxu0 %v188
    %256 = vmatmul.bf16.gmra.mxu0 %v220
    %v257 = vpop.f32.mrf.mxu0
    %v258 = vadd.f32 %v124, %v257
    %v259 = vpop.f32.mrf.mxu0
    %260 = vdwg.mxu0
    %261 = vmatpush.bf16.msra.mxu0 0
    %262 = vmatpush.bf16.msra.mxu0 0
    %263 = vmatpush.bf16.msra.mxu0 0
    %264 = vmatpush.bf16.msra.mxu0 0
    %265 = vmatpush.bf16.msra.mxu0 0
    %266 = vmatpush.bf16.msra.mxu0 0
    %267 = vmatpush.bf16.msra.mxu0 %v197
    %268 = vmatpush.bf16.msra.mxu0 %v189
    %269 = vmatmul.bf16.gmra.mxu0 %v220
    %v270 = vpop.f32.mrf.mxu0
    %v271 = vadd.f32 %v125, %v270
    %v272 = vpop.f32.mrf.mxu0
    %273 = vdwg.mxu0
    %274 = vmatpush.bf16.msra.mxu0 0
    %275 = vmatpush.bf16.msra.mxu0 0
    %276 = vmatpush.bf16.msra.mxu0 0
    %277 = vmatpush.bf16.msra.mxu0 0
    %278 = vmatpush.bf16.msra.mxu0 0
    %279 = vmatpush.bf16.msra.mxu0 0
    %280 = vmatpush.bf16.msra.mxu0 %v198
    %281 = vmatpush.bf16.msra.mxu0 %v190
    %282 = vmatmul.bf16.gmra.mxu0 %v220
    %v283 = vpop.f32.mrf.mxu0
    %v284 = vadd.f32 %v126, %v283
    %v285 = vpop.f32.mrf.mxu0
    %286 = vdwg.mxu0
    %287 = vmatpush.bf16.msra.mxu0 0
    %288 = vmatpush.bf16.msra.mxu0 0
    %289 = vmatpush.bf16.msra.mxu0 0
    %290 = vmatpush.bf16.msra.mxu0 0
    %291 = vmatpush.bf16.msra.mxu0 0
    %292 = vmatpush.bf16.msra.mxu0 0
    %293 = vmatpush.bf16.msra.mxu0 %v199
    %294 = vmatpush.bf16.msra.mxu0 %v191
    %295 = vmatmul.bf16.gmra.mxu0 %v220
    %v296 = vpop.f32.mrf.mxu0
    %v297 = vadd.f32 %v127, %v296
    %v298 = vpop.f32.mrf.mxu0
    %299 = vdwg.mxu0
    %300 = vmatpush.bf16.msra.mxu0 0
    %301 = vmatpush.bf16.msra.mxu0 0
    %302 = vmatpush.bf16.msra.mxu0 0
    %303 = vmatpush.bf16.msra.mxu0 0
    %304 = vmatpush.bf16.msra.mxu0 0
    %305 = vmatpush.bf16.msra.mxu0 0
    %306 = vmatpush.bf16.msra.mxu0 %v200
    %307 = vmatpush.bf16.msra.mxu0 %v192
    %308 = vmatmul.bf16.gmra.mxu0 %v220
    %v309 = vpop.f32.mrf.mxu0
    %v310 = vadd.f32 %v128, %v309
    %v311 = vpop.f32.mrf.mxu0
    %312 = vdwg.mxu0
    %313 = vmatpush.bf16.msra.mxu0 0
    %314 = vmatpush.bf16.msra.mxu0 0
    %315 = vmatpush.bf16.msra.mxu0 0
    %316 = vmatpush.bf16.msra.mxu0 0
    %317 = vmatpush.bf16.msra.mxu0 0
    %318 = vmatpush.bf16.msra.mxu0 0
    %319 = vmatpush.bf16.msra.mxu0 %v201
    %320 = vmatpush.bf16.msra.mxu0 %v193
    %321 = vmatmul.bf16.gmra.mxu0 %v220
    %v322 = vpop.f32.mrf.mxu0
    %v323 = vadd.f32 %v129, %v322
    %v324 = vpop.f32.mrf.mxu0
    %325 = vdwg.mxu0
    %vm326 = vcmp.gt.f32.partialorder %v232, 0.0
    %vm327 = vcmp.gt.f32.partialorder %v245, 0.0
    %vm328 = vcmp.gt.f32.partialorder %v258, 0.0
    %vm329 = vcmp.gt.f32.partialorder %v271, 0.0
    %vm330 = vcmp.gt.f32.partialorder %v284, 0.0
    %vm331 = vcmp.gt.f32.partialorder %v297, 0.0
    %vm332 = vcmp.gt.f32.partialorder %v310, 0.0
    %vm333 = vcmp.gt.f32.partialorder %v323, 0.0
    %v334 = vmul.f32 %v232, 0.2
    %v335 = vmul.f32 %v245, 0.2
    %v336 = vmul.f32 %v258, 0.2
    %v337 = vmul.f32 %v271, 0.2
    %v338 = vmul.f32 %v284, 0.2
    %v339 = vmul.f32 %v297, 0.2
    %v340 = vmul.f32 %v310, 0.2
    %v341 = vmul.f32 %v323, 0.2
    %v342 = vsel %vm326, %v232, %v334
    %v343 = vsel %vm327, %v245, %v335
    %v344 = vsel %vm328, %v258, %v336
    %v345 = vsel %vm329, %v271, %v337
    %v346 = vsel %vm330, %v284, %v338
    %v347 = vsel %vm331, %v297, %v339
    %v348 = vsel %vm332, %v310, %v340
    %v349 = vsel %vm333, %v323, %v341
    %v350 = vpack.c.bf16 %v342, %v342
    %v351 = vpack.c.bf16 %v343, %v343
    %v352 = vpack.c.bf16 %v344, %v344
    %v353 = vpack.c.bf16 %v345, %v345
    %v354 = vpack.c.bf16 %v346, %v346
    %v355 = vpack.c.bf16 %v347, %v347
    %v356 = vpack.c.bf16 %v348, %v348
    %v357 = vpack.c.bf16 %v349, %v349
    %v358 = vld [vmem:[#allocation5] sm:$0xff]
    %v359 = vld [vmem:[#allocation5 + $0x8] sm:$0xff]
    %v360 = vld [vmem:[#allocation5 + $0x10] sm:$0xff]
    %v361 = vld [vmem:[#allocation5 + $0x18] sm:$0xff]
    %v362 = vld [vmem:[#allocation5 + $0x20] sm:$0xff]
    %v363 = vld [vmem:[#allocation5 + $0x28] sm:$0xff]
    %v364 = vld [vmem:[#allocation5 + $0x30] sm:$0xff]
    %v365 = vld [vmem:[#allocation5 + $0x38] sm:$0xff]
    %v366 = vld [vmem:[#allocation5 + $0x40] sm:$0xff]
    %v367 = vld [vmem:[#allocation5 + $0x48] sm:$0xff]
    %v368 = vld [vmem:[#allocation5 + $0x50] sm:$0xff]
    %v369 = vld [vmem:[#allocation5 + $0x58] sm:$0xff]
    %v370 = vld [vmem:[#allocation5 + $0x60] sm:$0xff]
    %v371 = vld [vmem:[#allocation5 + $0x68] sm:$0xff]
    %v372 = vld [vmem:[#allocation5 + $0x70] sm:$0xff]
    %v373 = vld [vmem:[#allocation5 + $0x78] sm:$0xff]
    %v374 = vld [vmem:[#allocation5 + $0x80] sm:$0xff]
    %v375 = vld [vmem:[#allocation5 + $0x88] sm:$0xff]
    %v376 = vld [vmem:[#allocation5 + $0x90] sm:$0xff]
    %v377 = vld [vmem:[#allocation5 + $0x98] sm:$0xff]
    %v378 = vld [vmem:[#allocation5 + $0xa0] sm:$0xff]
    %v379 = vld [vmem:[#allocation5 + $0xa8] sm:$0xff]
    %v380 = vld [vmem:[#allocation5 + $0xb0] sm:$0xff]
    %v381 = vld [vmem:[#allocation5 + $0xb8] sm:$0xff]
    %v382 = vld [vmem:[#allocation5 + $0xc0] sm:$0xff]
    %v383 = vld [vmem:[#allocation5 + $0xc8] sm:$0xff]
    %v384 = vld [vmem:[#allocation5 + $0xd0] sm:$0xff]
    %v385 = vld [vmem:[#allocation5 + $0xd8] sm:$0xff]
    %v386 = vld [vmem:[#allocation5 + $0xe0] sm:$0xff]
    %v387 = vld [vmem:[#allocation5 + $0xe8] sm:$0xff]
    %v388 = vld [vmem:[#allocation5 + $0xf0] sm:$0xff]
    %v389 = vld [vmem:[#allocation5 + $0xf8] sm:$0xff]
    %v390 = vld [vmem:[#allocation5 + $0x100] sm:$0xff]
    %v391 = vld [vmem:[#allocation5 + $0x108] sm:$0xff]
    %v392 = vld [vmem:[#allocation5 + $0x110] sm:$0xff]
    %v393 = vld [vmem:[#allocation5 + $0x118] sm:$0xff]
    %v394 = vld [vmem:[#allocation5 + $0x120] sm:$0xff]
    %v395 = vld [vmem:[#allocation5 + $0x128] sm:$0xff]
    %v396 = vld [vmem:[#allocation5 + $0x130] sm:$0xff]
    %v397 = vld [vmem:[#allocation5 + $0x138] sm:$0xff]
    %v398 = vld [vmem:[#allocation5 + $0x140] sm:$0xff]
    %v399 = vld [vmem:[#allocation5 + $0x148] sm:$0xff]
    %v400 = vld [vmem:[#allocation5 + $0x150] sm:$0xff]
    %v401 = vld [vmem:[#allocation5 + $0x158] sm:$0xff]
    %v402 = vld [vmem:[#allocation5 + $0x160] sm:$0xff]
    %v403 = vld [vmem:[#allocation5 + $0x168] sm:$0xff]
    %v404 = vld [vmem:[#allocation5 + $0x170] sm:$0xff]
    %v405 = vld [vmem:[#allocation5 + $0x178] sm:$0xff]
    %v406 = vld [vmem:[#allocation5 + $0x180] sm:$0xff]
    %v407 = vld [vmem:[#allocation5 + $0x188] sm:$0xff]
    %v408 = vld [vmem:[#allocation5 + $0x190] sm:$0xff]
    %v409 = vld [vmem:[#allocation5 + $0x198] sm:$0xff]
    %v410 = vld [vmem:[#allocation5 + $0x1a0] sm:$0xff]
    %v411 = vld [vmem:[#allocation5 + $0x1a8] sm:$0xff]
    %v412 = vld [vmem:[#allocation5 + $0x1b0] sm:$0xff]
    %v413 = vld [vmem:[#allocation5 + $0x1b8] sm:$0xff]
    %v414 = vld [vmem:[#allocation5 + $0x1c0] sm:$0xff]
    %v415 = vld [vmem:[#allocation5 + $0x1c8] sm:$0xff]
    %v416 = vld [vmem:[#allocation5 + $0x1d0] sm:$0xff]
    %v417 = vld [vmem:[#allocation5 + $0x1d8] sm:$0xff]
    %v418 = vld [vmem:[#allocation5 + $0x1e0] sm:$0xff]
    %v419 = vld [vmem:[#allocation5 + $0x1e8] sm:$0xff]
    %v420 = vld [vmem:[#allocation5 + $0x1f0] sm:$0xff]
    %v421 = vld [vmem:[#allocation5 + $0x1f8] sm:$0xff]
    %v422 = vld [vmem:[#allocation5 + $0x200] sm:$0xff]
    %v423 = vld [vmem:[#allocation5 + $0x208] sm:$0xff]
    %v424 = vld [vmem:[#allocation5 + $0x210] sm:$0xff]
    %v425 = vld [vmem:[#allocation5 + $0x218] sm:$0xff]
    %v426 = vld [vmem:[#allocation5 + $0x220] sm:$0xff]
    %v427 = vld [vmem:[#allocation5 + $0x228] sm:$0xff]
    %v428 = vld [vmem:[#allocation5 + $0x230] sm:$0xff]
    %v429 = vld [vmem:[#allocation5 + $0x238] sm:$0xff]
    %v430 = vld [vmem:[#allocation5 + $0x240] sm:$0xff]
    %v431 = vld [vmem:[#allocation5 + $0x248] sm:$0xff]
    %v432 = vld [vmem:[#allocation5 + $0x250] sm:$0xff]
    %v433 = vld [vmem:[#allocation5 + $0x258] sm:$0xff]
    %v434 = vld [vmem:[#allocation5 + $0x260] sm:$0xff]
    %v435 = vld [vmem:[#allocation5 + $0x268] sm:$0xff]
    %v436 = vld [vmem:[#allocation5 + $0x270] sm:$0xff]
    %v437 = vld [vmem:[#allocation5 + $0x278] sm:$0xff]
    %v438 = vld [vmem:[#allocation5 + $0x280] sm:$0xff]
    %v439 = vld [vmem:[#allocation5 + $0x288] sm:$0xff]
    %v440 = vld [vmem:[#allocation5 + $0x290] sm:$0xff]
    %v441 = vld [vmem:[#allocation5 + $0x298] sm:$0xff]
    %v442 = vld [vmem:[#allocation5 + $0x2a0] sm:$0xff]
    %v443 = vld [vmem:[#allocation5 + $0x2a8] sm:$0xff]
    %v444 = vld [vmem:[#allocation5 + $0x2b0] sm:$0xff]
    %v445 = vld [vmem:[#allocation5 + $0x2b8] sm:$0xff]
    %v446 = vld [vmem:[#allocation5 + $0x2c0] sm:$0xff]
    %v447 = vld [vmem:[#allocation5 + $0x2c8] sm:$0xff]
    %v448 = vld [vmem:[#allocation5 + $0x2d0] sm:$0xff]
    %v449 = vld [vmem:[#allocation5 + $0x2d8] sm:$0xff]
    %v450 = vld [vmem:[#allocation5 + $0x2e0] sm:$0xff]
    %v451 = vld [vmem:[#allocation5 + $0x2e8] sm:$0xff]
    %v452 = vld [vmem:[#allocation5 + $0x2f0] sm:$0xff]
    %v453 = vld [vmem:[#allocation5 + $0x2f8] sm:$0xff]
    %v454 = vld [vmem:[#allocation5 + $0x300] sm:$0xff]
    %v455 = vld [vmem:[#allocation5 + $0x308] sm:$0xff]
    %v456 = vld [vmem:[#allocation5 + $0x310] sm:$0xff]
    %v457 = vld [vmem:[#allocation5 + $0x318] sm:$0xff]
    %v458 = vld [vmem:[#allocation5 + $0x320] sm:$0xff]
    %v459 = vld [vmem:[#allocation5 + $0x328] sm:$0xff]
    %v460 = vld [vmem:[#allocation5 + $0x330] sm:$0xff]
    %v461 = vld [vmem:[#allocation5 + $0x338] sm:$0xff]
    %v462 = vld [vmem:[#allocation5 + $0x340] sm:$0xff]
    %v463 = vld [vmem:[#allocation5 + $0x348] sm:$0xff]
    %v464 = vld [vmem:[#allocation5 + $0x350] sm:$0xff]
    %v465 = vld [vmem:[#allocation5 + $0x358] sm:$0xff]
    %v466 = vld [vmem:[#allocation5 + $0x360] sm:$0xff]
    %v467 = vld [vmem:[#allocation5 + $0x368] sm:$0xff]
    %v468 = vld [vmem:[#allocation5 + $0x370] sm:$0xff]
    %v469 = vld [vmem:[#allocation5 + $0x378] sm:$0xff]
    %v470 = vld [vmem:[#allocation5 + $0x380] sm:$0xff]
    %v471 = vld [vmem:[#allocation5 + $0x388] sm:$0xff]
    %v472 = vld [vmem:[#allocation5 + $0x390] sm:$0xff]
    %v473 = vld [vmem:[#allocation5 + $0x398] sm:$0xff]
    %v474 = vld [vmem:[#allocation5 + $0x3a0] sm:$0xff]
    %v475 = vld [vmem:[#allocation5 + $0x3a8] sm:$0xff]
    %v476 = vld [vmem:[#allocation5 + $0x3b0] sm:$0xff]
    %v477 = vld [vmem:[#allocation5 + $0x3b8] sm:$0xff]
    %v478 = vld [vmem:[#allocation5 + $0x3c0] sm:$0xff]
    %v479 = vld [vmem:[#allocation5 + $0x3c8] sm:$0xff]
    %v480 = vld [vmem:[#allocation5 + $0x3d0] sm:$0xff]
    %v481 = vld [vmem:[#allocation5 + $0x3d8] sm:$0xff]
    %v482 = vld [vmem:[#allocation5 + $0x3e0] sm:$0xff]
    %v483 = vld [vmem:[#allocation5 + $0x3e8] sm:$0xff]
    %v484 = vld [vmem:[#allocation5 + $0x3f0] sm:$0xff]
    %v485 = vld [vmem:[#allocation5 + $0x3f8] sm:$0xff]
    %v486 = vld [vmem:[#allocation5 + $0x400] sm:$0xff]
    %v487 = vld [vmem:[#allocation5 + $0x408] sm:$0xff]
    %v488 = vld [vmem:[#allocation5 + $0x410] sm:$0xff]
    %v489 = vld [vmem:[#allocation5 + $0x418] sm:$0xff]
    %v490 = vld [vmem:[#allocation5 + $0x420] sm:$0xff]
    %v491 = vld [vmem:[#allocation5 + $0x428] sm:$0xff]
    %v492 = vld [vmem:[#allocation5 + $0x430] sm:$0xff]
    %v493 = vld [vmem:[#allocation5 + $0x438] sm:$0xff]
    %v494 = vld [vmem:[#allocation5 + $0x440] sm:$0xff]
    %v495 = vld [vmem:[#allocation5 + $0x448] sm:$0xff]
    %v496 = vld [vmem:[#allocation5 + $0x450] sm:$0xff]
    %v497 = vld [vmem:[#allocation5 + $0x458] sm:$0xff]
    %v498 = vld [vmem:[#allocation5 + $0x460] sm:$0xff]
    %v499 = vld [vmem:[#allocation5 + $0x468] sm:$0xff]
    %v500 = vld [vmem:[#allocation5 + $0x470] sm:$0xff]
    %v501 = vld [vmem:[#allocation5 + $0x478] sm:$0xff]
    %v502 = vld [vmem:[#allocation5 + $0x480] sm:$0xff]
    %v503 = vld [vmem:[#allocation5 + $0x488] sm:$0xff]
    %v504 = vld [vmem:[#allocation5 + $0x490] sm:$0xff]
    %v505 = vld [vmem:[#allocation5 + $0x498] sm:$0xff]
    %v506 = vld [vmem:[#allocation5 + $0x4a0] sm:$0xff]
    %v507 = vld [vmem:[#allocation5 + $0x4a8] sm:$0xff]
    %v508 = vld [vmem:[#allocation5 + $0x4b0] sm:$0xff]
    %v509 = vld [vmem:[#allocation5 + $0x4b8] sm:$0xff]
    %v510 = vld [vmem:[#allocation5 + $0x4c0] sm:$0xff]
    %v511 = vld [vmem:[#allocation5 + $0x4c8] sm:$0xff]
    %v512 = vld [vmem:[#allocation5 + $0x4d0] sm:$0xff]
    %v513 = vld [vmem:[#allocation5 + $0x4d8] sm:$0xff]
    %v514 = vld [vmem:[#allocation5 + $0x4e0] sm:$0xff]
    %v515 = vld [vmem:[#allocation5 + $0x4e8] sm:$0xff]
    %v516 = vld [vmem:[#allocation5 + $0x4f0] sm:$0xff]
    %v517 = vld [vmem:[#allocation5 + $0x4f8] sm:$0xff]
    %v518 = vld [vmem:[#allocation5 + $0x500] sm:$0xff]
    %v519 = vld [vmem:[#allocation5 + $0x508] sm:$0xff]
    %v520 = vld [vmem:[#allocation5 + $0x510] sm:$0xff]
    %v521 = vld [vmem:[#allocation5 + $0x518] sm:$0xff]
    %v522 = vld [vmem:[#allocation5 + $0x520] sm:$0xff]
    %v523 = vld [vmem:[#allocation5 + $0x528] sm:$0xff]
    %v524 = vld [vmem:[#allocation5 + $0x530] sm:$0xff]
    %v525 = vld [vmem:[#allocation5 + $0x538] sm:$0xff]
    %v526 = vld [vmem:[#allocation5 + $0x540] sm:$0xff]
    %v527 = vld [vmem:[#allocation5 + $0x548] sm:$0xff]
    %v528 = vld [vmem:[#allocation5 + $0x550] sm:$0xff]
    %v529 = vld [vmem:[#allocation5 + $0x558] sm:$0xff]
    %v530 = vld [vmem:[#allocation5 + $0x560] sm:$0xff]
    %v531 = vld [vmem:[#allocation5 + $0x568] sm:$0xff]
    %v532 = vld [vmem:[#allocation5 + $0x570] sm:$0xff]
    %v533 = vld [vmem:[#allocation5 + $0x578] sm:$0xff]
    %v534 = vld [vmem:[#allocation5 + $0x580] sm:$0xff]
    %v535 = vld [vmem:[#allocation5 + $0x588] sm:$0xff]
    %v536 = vld [vmem:[#allocation5 + $0x590] sm:$0xff]
    %v537 = vld [vmem:[#allocation5 + $0x598] sm:$0xff]
    %v538 = vld [vmem:[#allocation5 + $0x5a0] sm:$0xff]
    %v539 = vld [vmem:[#allocation5 + $0x5a8] sm:$0xff]
    %v540 = vld [vmem:[#allocation5 + $0x5b0] sm:$0xff]
    %v541 = vld [vmem:[#allocation5 + $0x5b8] sm:$0xff]
    %v542 = vld [vmem:[#allocation5 + $0x5c0] sm:$0xff]
    %v543 = vld [vmem:[#allocation5 + $0x5c8] sm:$0xff]
    %v544 = vld [vmem:[#allocation5 + $0x5d0] sm:$0xff]
    %v545 = vld [vmem:[#allocation5 + $0x5d8] sm:$0xff]
    %v546 = vld [vmem:[#allocation5 + $0x5e0] sm:$0xff]
    %v547 = vld [vmem:[#allocation5 + $0x5e8] sm:$0xff]
    %v548 = vld [vmem:[#allocation5 + $0x5f0] sm:$0xff]
    %v549 = vld [vmem:[#allocation5 + $0x5f8] sm:$0xff]
    %v550 = vld [vmem:[#allocation5 + $0x600] sm:$0xff]
    %v551 = vld [vmem:[#allocation5 + $0x608] sm:$0xff]
    %v552 = vld [vmem:[#allocation5 + $0x610] sm:$0xff]
    %v553 = vld [vmem:[#allocation5 + $0x618] sm:$0xff]
    %v554 = vld [vmem:[#allocation5 + $0x620] sm:$0xff]
    %v555 = vld [vmem:[#allocation5 + $0x628] sm:$0xff]
    %v556 = vld [vmem:[#allocation5 + $0x630] sm:$0xff]
    %v557 = vld [vmem:[#allocation5 + $0x638] sm:$0xff]
    %v558 = vld [vmem:[#allocation5 + $0x640] sm:$0xff]
    %v559 = vld [vmem:[#allocation5 + $0x648] sm:$0xff]
    %v560 = vld [vmem:[#allocation5 + $0x650] sm:$0xff]
    %v561 = vld [vmem:[#allocation5 + $0x658] sm:$0xff]
    %v562 = vld [vmem:[#allocation5 + $0x660] sm:$0xff]
    %v563 = vld [vmem:[#allocation5 + $0x668] sm:$0xff]
    %v564 = vld [vmem:[#allocation5 + $0x670] sm:$0xff]
    %v565 = vld [vmem:[#allocation5 + $0x678] sm:$0xff]
    %v566 = vld [vmem:[#allocation5 + $0x680] sm:$0xff]
    %v567 = vld [vmem:[#allocation5 + $0x688] sm:$0xff]
    %v568 = vld [vmem:[#allocation5 + $0x690] sm:$0xff]
    %v569 = vld [vmem:[#allocation5 + $0x698] sm:$0xff]
    %v570 = vld [vmem:[#allocation5 + $0x6a0] sm:$0xff]
    %v571 = vld [vmem:[#allocation5 + $0x6a8] sm:$0xff]
    %v572 = vld [vmem:[#allocation5 + $0x6b0] sm:$0xff]
    %v573 = vld [vmem:[#allocation5 + $0x6b8] sm:$0xff]
    %v574 = vld [vmem:[#allocation5 + $0x6c0] sm:$0xff]
    %v575 = vld [vmem:[#allocation5 + $0x6c8] sm:$0xff]
    %v576 = vld [vmem:[#allocation5 + $0x6d0] sm:$0xff]
    %v577 = vld [vmem:[#allocation5 + $0x6d8] sm:$0xff]
    %v578 = vld [vmem:[#allocation5 + $0x6e0] sm:$0xff]
    %v579 = vld [vmem:[#allocation5 + $0x6e8] sm:$0xff]
    %v580 = vld [vmem:[#allocation5 + $0x6f0] sm:$0xff]
    %v581 = vld [vmem:[#allocation5 + $0x6f8] sm:$0xff]
    %v582 = vld [vmem:[#allocation5 + $0x700] sm:$0xff]
    %v583 = vld [vmem:[#allocation5 + $0x708] sm:$0xff]
    %v584 = vld [vmem:[#allocation5 + $0x710] sm:$0xff]
    %v585 = vld [vmem:[#allocation5 + $0x718] sm:$0xff]
    %v586 = vld [vmem:[#allocation5 + $0x720] sm:$0xff]
    %v587 = vld [vmem:[#allocation5 + $0x728] sm:$0xff]
    %v588 = vld [vmem:[#allocation5 + $0x730] sm:$0xff]
    %v589 = vld [vmem:[#allocation5 + $0x738] sm:$0xff]
    %v590 = vld [vmem:[#allocation5 + $0x740] sm:$0xff]
    %v591 = vld [vmem:[#allocation5 + $0x748] sm:$0xff]
    %v592 = vld [vmem:[#allocation5 + $0x750] sm:$0xff]
    %v593 = vld [vmem:[#allocation5 + $0x758] sm:$0xff]
    %v594 = vld [vmem:[#allocation5 + $0x760] sm:$0xff]
    %v595 = vld [vmem:[#allocation5 + $0x768] sm:$0xff]
    %v596 = vld [vmem:[#allocation5 + $0x770] sm:$0xff]
    %v597 = vld [vmem:[#allocation5 + $0x778] sm:$0xff]
    %v598 = vld [vmem:[#allocation5 + $0x780] sm:$0xff]
    %v599 = vld [vmem:[#allocation5 + $0x788] sm:$0xff]
    %v600 = vld [vmem:[#allocation5 + $0x790] sm:$0xff]
    %v601 = vld [vmem:[#allocation5 + $0x798] sm:$0xff]
    %v602 = vld [vmem:[#allocation5 + $0x7a0] sm:$0xff]
    %v603 = vld [vmem:[#allocation5 + $0x7a8] sm:$0xff]
    %v604 = vld [vmem:[#allocation5 + $0x7b0] sm:$0xff]
    %v605 = vld [vmem:[#allocation5 + $0x7b8] sm:$0xff]
    %v606 = vld [vmem:[#allocation5 + $0x7c0] sm:$0xff]
    %v607 = vld [vmem:[#allocation5 + $0x7c8] sm:$0xff]
    %v608 = vld [vmem:[#allocation5 + $0x7d0] sm:$0xff]
    %v609 = vld [vmem:[#allocation5 + $0x7d8] sm:$0xff]
    %v610 = vld [vmem:[#allocation5 + $0x7e0] sm:$0xff]
    %v611 = vld [vmem:[#allocation5 + $0x7e8] sm:$0xff]
    %v612 = vld [vmem:[#allocation5 + $0x7f0] sm:$0xff]
    %v613 = vld [vmem:[#allocation5 + $0x7f8] sm:$0xff]
    %v614 = vld [vmem:[%s4] sm:$0xf]
    %v616 = vperm.slane %v614, 0
    %v617 = vperm.slane %v614, 1
    %v618 = vperm.slane %v614, 2
    %v619 = vperm.slane %v614, 3
    %v880 = vunpack.c.l.b16 %v358
    %v881 = vunpack.c.h.b16 %v358
    %v882 = vunpack.c.l.b16 %v359
    %v883 = vunpack.c.h.b16 %v359
    %v884 = vunpack.c.l.b16 %v360
    %v885 = vunpack.c.h.b16 %v360
    %v886 = vunpack.c.l.b16 %v361
    %v887 = vunpack.c.h.b16 %v361
    %v888 = vunpack.c.l.b16 %v362
    %v889 = vunpack.c.h.b16 %v362
    %v890 = vunpack.c.l.b16 %v363
    %v891 = vunpack.c.h.b16 %v363
    %v892 = vunpack.c.l.b16 %v364
    %v893 = vunpack.c.h.b16 %v364
    %v894 = vunpack.c.l.b16 %v365
    %v895 = vunpack.c.h.b16 %v365
    %v896 = vunpack.c.l.b16 %v366
    %v897 = vunpack.c.h.b16 %v366
    %v898 = vunpack.c.l.b16 %v367
    %v899 = vunpack.c.h.b16 %v367
    %v900 = vunpack.c.l.b16 %v368
    %v901 = vunpack.c.h.b16 %v368
    %v902 = vunpack.c.l.b16 %v369
    %v903 = vunpack.c.h.b16 %v369
    %v904 = vunpack.c.l.b16 %v370
    %v905 = vunpack.c.h.b16 %v370
    %v906 = vunpack.c.l.b16 %v371
    %v907 = vunpack.c.h.b16 %v371
    %v908 = vunpack.c.l.b16 %v372
    %v909 = vunpack.c.h.b16 %v372
    %v910 = vunpack.c.l.b16 %v373
    %v911 = vunpack.c.h.b16 %v373
    %v912 = vunpack.c.l.b16 %v374
    %v913 = vunpack.c.h.b16 %v374
    %v914 = vunpack.c.l.b16 %v375
    %v915 = vunpack.c.h.b16 %v375
    %v916 = vunpack.c.l.b16 %v376
    %v917 = vunpack.c.h.b16 %v376
    %v918 = vunpack.c.l.b16 %v377
    %v919 = vunpack.c.h.b16 %v377
    %v920 = vunpack.c.l.b16 %v378
    %v921 = vunpack.c.h.b16 %v378
    %v922 = vunpack.c.l.b16 %v379
    %v923 = vunpack.c.h.b16 %v379
    %v924 = vunpack.c.l.b16 %v380
    %v925 = vunpack.c.h.b16 %v380
    %v926 = vunpack.c.l.b16 %v381
    %v927 = vunpack.c.h.b16 %v381
    %v928 = vunpack.c.l.b16 %v382
    %v929 = vunpack.c.h.b16 %v382
    %v930 = vunpack.c.l.b16 %v383
    %v931 = vunpack.c.h.b16 %v383
    %v932 = vunpack.c.l.b16 %v384
    %v933 = vunpack.c.h.b16 %v384
    %v934 = vunpack.c.l.b16 %v385
    %v935 = vunpack.c.h.b16 %v385
    %v936 = vunpack.c.l.b16 %v386
    %v937 = vunpack.c.h.b16 %v386
    %v938 = vunpack.c.l.b16 %v387
    %v939 = vunpack.c.h.b16 %v387
    %v940 = vunpack.c.l.b16 %v388
    %v941 = vunpack.c.h.b16 %v388
    %v942 = vunpack.c.l.b16 %v389
    %v943 = vunpack.c.h.b16 %v389
    %v944 = vunpack.c.l.b16 %v390
    %v945 = vunpack.c.h.b16 %v390
    %v946 = vunpack.c.l.b16 %v391
    %v947 = vunpack.c.h.b16 %v391
    %v948 = vunpack.c.l.b16 %v392
    %v949 = vunpack.c.h.b16 %v392
    %v950 = vunpack.c.l.b16 %v393
    %v951 = vunpack.c.h.b16 %v393
    %v952 = vunpack.c.l.b16 %v394
    %v953 = vunpack.c.h.b16 %v394
    %v954 = vunpack.c.l.b16 %v395
    %v955 = vunpack.c.h.b16 %v395
    %v956 = vunpack.c.l.b16 %v396
    %v957 = vunpack.c.h.b16 %v396
    %v958 = vunpack.c.l.b16 %v397
    %v959 = vunpack.c.h.b16 %v397
    %v960 = vunpack.c.l.b16 %v398
    %v961 = vunpack.c.h.b16 %v398
    %v962 = vunpack.c.l.b16 %v399
    %v963 = vunpack.c.h.b16 %v399
    %v964 = vunpack.c.l.b16 %v400
    %v965 = vunpack.c.h.b16 %v400
    %v966 = vunpack.c.l.b16 %v401
    %v967 = vunpack.c.h.b16 %v401
    %v968 = vunpack.c.l.b16 %v402
    %v969 = vunpack.c.h.b16 %v402
    %v970 = vunpack.c.l.b16 %v403
    %v971 = vunpack.c.h.b16 %v403
    %v972 = vunpack.c.l.b16 %v404
    %v973 = vunpack.c.h.b16 %v404
    %v974 = vunpack.c.l.b16 %v405
    %v975 = vunpack.c.h.b16 %v405
    %v976 = vunpack.c.l.b16 %v406
    %v977 = vunpack.c.h.b16 %v406
    %v978 = vunpack.c.l.b16 %v407
    %v979 = vunpack.c.h.b16 %v407
    %v980 = vunpack.c.l.b16 %v408
    %v981 = vunpack.c.h.b16 %v408
    %v982 = vunpack.c.l.b16 %v409
    %v983 = vunpack.c.h.b16 %v409
    %v984 = vunpack.c.l.b16 %v410
    %v985 = vunpack.c.h.b16 %v410
    %v986 = vunpack.c.l.b16 %v411
    %v987 = vunpack.c.h.b16 %v411
    %v988 = vunpack.c.l.b16 %v412
    %v989 = vunpack.c.h.b16 %v412
    %v990 = vunpack.c.l.b16 %v413
    %v991 = vunpack.c.h.b16 %v413
    %v992 = vunpack.c.l.b16 %v414
    %v993 = vunpack.c.h.b16 %v414
    %v994 = vunpack.c.l.b16 %v415
    %v995 = vunpack.c.h.b16 %v415
    %v996 = vunpack.c.l.b16 %v416
    %v997 = vunpack.c.h.b16 %v416
    %v998 = vunpack.c.l.b16 %v417
    %v999 = vunpack.c.h.b16 %v417
    %v1000 = vunpack.c.l.b16 %v418
    %v1001 = vunpack.c.h.b16 %v418
    %v1002 = vunpack.c.l.b16 %v419
    %v1003 = vunpack.c.h.b16 %v419
    %v1004 = vunpack.c.l.b16 %v420
    %v1005 = vunpack.c.h.b16 %v420
    %v1006 = vunpack.c.l.b16 %v421
    %v1007 = vunpack.c.h.b16 %v421
    %v1008 = vunpack.c.l.b16 %v422
    %v1009 = vunpack.c.h.b16 %v422
    %v1010 = vunpack.c.l.b16 %v423
    %v1011 = vunpack.c.h.b16 %v423
    %v1012 = vunpack.c.l.b16 %v424
    %v1013 = vunpack.c.h.b16 %v424
    %v1014 = vunpack.c.l.b16 %v425
    %v1015 = vunpack.c.h.b16 %v425
    %v1016 = vunpack.c.l.b16 %v426
    %v1017 = vunpack.c.h.b16 %v426
    %v1018 = vunpack.c.l.b16 %v427
    %v1019 = vunpack.c.h.b16 %v427
    %v1020 = vunpack.c.l.b16 %v428
    %v1021 = vunpack.c.h.b16 %v428
    %v1022 = vunpack.c.l.b16 %v429
    %v1023 = vunpack.c.h.b16 %v429
    %v1024 = vunpack.c.l.b16 %v430
    %v1025 = vunpack.c.h.b16 %v430
    %v1026 = vunpack.c.l.b16 %v431
    %v1027 = vunpack.c.h.b16 %v431
    %v1028 = vunpack.c.l.b16 %v432
    %v1029 = vunpack.c.h.b16 %v432
    %v1030 = vunpack.c.l.b16 %v433
    %v1031 = vunpack.c.h.b16 %v433
    %v1032 = vunpack.c.l.b16 %v434
    %v1033 = vunpack.c.h.b16 %v434
    %v1034 = vunpack.c.l.b16 %v435
    %v1035 = vunpack.c.h.b16 %v435
    %v1036 = vunpack.c.l.b16 %v436
    %v1037 = vunpack.c.h.b16 %v436
    %v1038 = vunpack.c.l.b16 %v437
    %v1039 = vunpack.c.h.b16 %v437
    %v1040 = vunpack.c.l.b16 %v438
    %v1041 = vunpack.c.h.b16 %v438
    %v1042 = vunpack.c.l.b16 %v439
    %v1043 = vunpack.c.h.b16 %v439
    %v1044 = vunpack.c.l.b16 %v440
    %v1045 = vunpack.c.h.b16 %v440
    %v1046 = vunpack.c.l.b16 %v441
    %v1047 = vunpack.c.h.b16 %v441
    %v1048 = vunpack.c.l.b16 %v442
    %v1049 = vunpack.c.h.b16 %v442
    %v1050 = vunpack.c.l.b16 %v443
    %v1051 = vunpack.c.h.b16 %v443
    %v1052 = vunpack.c.l.b16 %v444
    %v1053 = vunpack.c.h.b16 %v444
    %v1054 = vunpack.c.l.b16 %v445
    %v1055 = vunpack.c.h.b16 %v445
    %v1056 = vunpack.c.l.b16 %v446
    %v1057 = vunpack.c.h.b16 %v446
    %v1058 = vunpack.c.l.b16 %v447
    %v1059 = vunpack.c.h.b16 %v447
    %v1060 = vunpack.c.l.b16 %v448
    %v1061 = vunpack.c.h.b16 %v448
    %v1062 = vunpack.c.l.b16 %v449
    %v1063 = vunpack.c.h.b16 %v449
    %v1064 = vunpack.c.l.b16 %v450
    %v1065 = vunpack.c.h.b16 %v450
    %v1066 = vunpack.c.l.b16 %v451
    %v1067 = vunpack.c.h.b16 %v451
    %v1068 = vunpack.c.l.b16 %v452
    %v1069 = vunpack.c.h.b16 %v452
    %v1070 = vunpack.c.l.b16 %v453
    %v1071 = vunpack.c.h.b16 %v453
    %v1072 = vunpack.c.l.b16 %v454
    %v1073 = vunpack.c.h.b16 %v454
    %v1074 = vunpack.c.l.b16 %v455
    %v1075 = vunpack.c.h.b16 %v455
    %v1076 = vunpack.c.l.b16 %v456
    %v1077 = vunpack.c.h.b16 %v456
    %v1078 = vunpack.c.l.b16 %v457
    %v1079 = vunpack.c.h.b16 %v457
    %v1080 = vunpack.c.l.b16 %v458
    %v1081 = vunpack.c.h.b16 %v458
    %v1082 = vunpack.c.l.b16 %v459
    %v1083 = vunpack.c.h.b16 %v459
    %v1084 = vunpack.c.l.b16 %v460
    %v1085 = vunpack.c.h.b16 %v460
    %v1086 = vunpack.c.l.b16 %v461
    %v1087 = vunpack.c.h.b16 %v461
    %v1088 = vunpack.c.l.b16 %v462
    %v1089 = vunpack.c.h.b16 %v462
    %v1090 = vunpack.c.l.b16 %v463
    %v1091 = vunpack.c.h.b16 %v463
    %v1092 = vunpack.c.l.b16 %v464
    %v1093 = vunpack.c.h.b16 %v464
    %v1094 = vunpack.c.l.b16 %v465
    %v1095 = vunpack.c.h.b16 %v465
    %v1096 = vunpack.c.l.b16 %v466
    %v1097 = vunpack.c.h.b16 %v466
    %v1098 = vunpack.c.l.b16 %v467
    %v1099 = vunpack.c.h.b16 %v467
    %v1100 = vunpack.c.l.b16 %v468
    %v1101 = vunpack.c.h.b16 %v468
    %v1102 = vunpack.c.l.b16 %v469
    %v1103 = vunpack.c.h.b16 %v469
    %v1104 = vunpack.c.l.b16 %v470
    %v1105 = vunpack.c.h.b16 %v470
    %v1106 = vunpack.c.l.b16 %v471
    %v1107 = vunpack.c.h.b16 %v471
    %v1108 = vunpack.c.l.b16 %v472
    %v1109 = vunpack.c.h.b16 %v472
    %v1110 = vunpack.c.l.b16 %v473
    %v1111 = vunpack.c.h.b16 %v473
    %v1112 = vunpack.c.l.b16 %v474
    %v1113 = vunpack.c.h.b16 %v474
    %v1114 = vunpack.c.l.b16 %v475
    %v1115 = vunpack.c.h.b16 %v475
    %v1116 = vunpack.c.l.b16 %v476
    %v1117 = vunpack.c.h.b16 %v476
    %v1118 = vunpack.c.l.b16 %v477
    %v1119 = vunpack.c.h.b16 %v477
    %v1120 = vunpack.c.l.b16 %v478
    %v1121 = vunpack.c.h.b16 %v478
    %v1122 = vunpack.c.l.b16 %v479
    %v1123 = vunpack.c.h.b16 %v479
    %v1124 = vunpack.c.l.b16 %v480
    %v1125 = vunpack.c.h.b16 %v480
    %v1126 = vunpack.c.l.b16 %v481
    %v1127 = vunpack.c.h.b16 %v481
    %v1128 = vunpack.c.l.b16 %v482
    %v1129 = vunpack.c.h.b16 %v482
    %v1130 = vunpack.c.l.b16 %v483
    %v1131 = vunpack.c.h.b16 %v483
    %v1132 = vunpack.c.l.b16 %v484
    %v1133 = vunpack.c.h.b16 %v484
    %v1134 = vunpack.c.l.b16 %v485
    %v1135 = vunpack.c.h.b16 %v485
    %v1136 = vunpack.c.l.b16 %v486
    %v1137 = vunpack.c.h.b16 %v486
    %v1138 = vunpack.c.l.b16 %v487
    %v1139 = vunpack.c.h.b16 %v487
    %v1140 = vunpack.c.l.b16 %v488
    %v1141 = vunpack.c.h.b16 %v488
    %v1142 = vunpack.c.l.b16 %v489
    %v1143 = vunpack.c.h.b16 %v489
    %v1144 = vunpack.c.l.b16 %v490
    %v1145 = vunpack.c.h.b16 %v490
    %v1146 = vunpack.c.l.b16 %v491
    %v1147 = vunpack.c.h.b16 %v491
    %v1148 = vunpack.c.l.b16 %v492
    %v1149 = vunpack.c.h.b16 %v492
    %v1150 = vunpack.c.l.b16 %v493
    %v1151 = vunpack.c.h.b16 %v493
    %v1152 = vunpack.c.l.b16 %v494
    %v1153 = vunpack.c.h.b16 %v494
    %v1154 = vunpack.c.l.b16 %v495
    %v1155 = vunpack.c.h.b16 %v495
    %v1156 = vunpack.c.l.b16 %v496
    %v1157 = vunpack.c.h.b16 %v496
    %v1158 = vunpack.c.l.b16 %v497
    %v1159 = vunpack.c.h.b16 %v497
    %v1160 = vunpack.c.l.b16 %v498
    %v1161 = vunpack.c.h.b16 %v498
    %v1162 = vunpack.c.l.b16 %v499
    %v1163 = vunpack.c.h.b16 %v499
    %v1164 = vunpack.c.l.b16 %v500
    %v1165 = vunpack.c.h.b16 %v500
    %v1166 = vunpack.c.l.b16 %v501
    %v1167 = vunpack.c.h.b16 %v501
    %v1168 = vunpack.c.l.b16 %v502
    %v1169 = vunpack.c.h.b16 %v502
    %v1170 = vunpack.c.l.b16 %v503
    %v1171 = vunpack.c.h.b16 %v503
    %v1172 = vunpack.c.l.b16 %v504
    %v1173 = vunpack.c.h.b16 %v504
    %v1174 = vunpack.c.l.b16 %v505
    %v1175 = vunpack.c.h.b16 %v505
    %v1176 = vunpack.c.l.b16 %v506
    %v1177 = vunpack.c.h.b16 %v506
    %v1178 = vunpack.c.l.b16 %v507
    %v1179 = vunpack.c.h.b16 %v507
    %v1180 = vunpack.c.l.b16 %v508
    %v1181 = vunpack.c.h.b16 %v508
    %v1182 = vunpack.c.l.b16 %v509
    %v1183 = vunpack.c.h.b16 %v509
    %v1184 = vunpack.c.l.b16 %v510
    %v1185 = vunpack.c.h.b16 %v510
    %v1186 = vunpack.c.l.b16 %v511
    %v1187 = vunpack.c.h.b16 %v511
    %v1188 = vunpack.c.l.b16 %v512
    %v1189 = vunpack.c.h.b16 %v512
    %v1190 = vunpack.c.l.b16 %v513
    %v1191 = vunpack.c.h.b16 %v513
    %v1192 = vunpack.c.l.b16 %v514
    %v1193 = vunpack.c.h.b16 %v514
    %v1194 = vunpack.c.l.b16 %v515
    %v1195 = vunpack.c.h.b16 %v515
    %v1196 = vunpack.c.l.b16 %v516
    %v1197 = vunpack.c.h.b16 %v516
    %v1198 = vunpack.c.l.b16 %v517
    %v1199 = vunpack.c.h.b16 %v517
    %v1200 = vunpack.c.l.b16 %v518
    %v1201 = vunpack.c.h.b16 %v518
    %v1202 = vunpack.c.l.b16 %v519
    %v1203 = vunpack.c.h.b16 %v519
    %v1204 = vunpack.c.l.b16 %v520
    %v1205 = vunpack.c.h.b16 %v520
    %v1206 = vunpack.c.l.b16 %v521
    %v1207 = vunpack.c.h.b16 %v521
    %v1208 = vunpack.c.l.b16 %v522
    %v1209 = vunpack.c.h.b16 %v522
    %v1210 = vunpack.c.l.b16 %v523
    %v1211 = vunpack.c.h.b16 %v523
    %v1212 = vunpack.c.l.b16 %v524
    %v1213 = vunpack.c.h.b16 %v524
    %v1214 = vunpack.c.l.b16 %v525
    %v1215 = vunpack.c.h.b16 %v525
    %v1216 = vunpack.c.l.b16 %v526
    %v1217 = vunpack.c.h.b16 %v526
    %v1218 = vunpack.c.l.b16 %v527
    %v1219 = vunpack.c.h.b16 %v527
    %v1220 = vunpack.c.l.b16 %v528
    %v1221 = vunpack.c.h.b16 %v528
    %v1222 = vunpack.c.l.b16 %v529
    %v1223 = vunpack.c.h.b16 %v529
    %v1224 = vunpack.c.l.b16 %v530
    %v1225 = vunpack.c.h.b16 %v530
    %v1226 = vunpack.c.l.b16 %v531
    %v1227 = vunpack.c.h.b16 %v531
    %v1228 = vunpack.c.l.b16 %v532
    %v1229 = vunpack.c.h.b16 %v532
    %v1230 = vunpack.c.l.b16 %v533
    %v1231 = vunpack.c.h.b16 %v533
    %v1232 = vunpack.c.l.b16 %v534
    %v1233 = vunpack.c.h.b16 %v534
    %v1234 = vunpack.c.l.b16 %v535
    %v1235 = vunpack.c.h.b16 %v535
    %v1236 = vunpack.c.l.b16 %v536
    %v1237 = vunpack.c.h.b16 %v536
    %v1238 = vunpack.c.l.b16 %v537
    %v1239 = vunpack.c.h.b16 %v537
    %v1240 = vunpack.c.l.b16 %v538
    %v1241 = vunpack.c.h.b16 %v538
    %v1242 = vunpack.c.l.b16 %v539
    %v1243 = vunpack.c.h.b16 %v539
    %v1244 = vunpack.c.l.b16 %v540
    %v1245 = vunpack.c.h.b16 %v540
    %v1246 = vunpack.c.l.b16 %v541
    %v1247 = vunpack.c.h.b16 %v541
    %v1248 = vunpack.c.l.b16 %v542
    %v1249 = vunpack.c.h.b16 %v542
    %v1250 = vunpack.c.l.b16 %v543
    %v1251 = vunpack.c.h.b16 %v543
    %v1252 = vunpack.c.l.b16 %v544
    %v1253 = vunpack.c.h.b16 %v544
    %v1254 = vunpack.c.l.b16 %v545
    %v1255 = vunpack.c.h.b16 %v545
    %v1256 = vunpack.c.l.b16 %v546
    %v1257 = vunpack.c.h.b16 %v546
    %v1258 = vunpack.c.l.b16 %v547
    %v1259 = vunpack.c.h.b16 %v547
    %v1260 = vunpack.c.l.b16 %v548
    %v1261 = vunpack.c.h.b16 %v548
    %v1262 = vunpack.c.l.b16 %v549
    %v1263 = vunpack.c.h.b16 %v549
    %v1264 = vunpack.c.l.b16 %v550
    %v1265 = vunpack.c.h.b16 %v550
    %v1266 = vunpack.c.l.b16 %v551
    %v1267 = vunpack.c.h.b16 %v551
    %v1268 = vunpack.c.l.b16 %v552
    %v1269 = vunpack.c.h.b16 %v552
    %v1270 = vunpack.c.l.b16 %v553
    %v1271 = vunpack.c.h.b16 %v553
    %v1272 = vunpack.c.l.b16 %v554
    %v1273 = vunpack.c.h.b16 %v554
    %v1274 = vunpack.c.l.b16 %v555
    %v1275 = vunpack.c.h.b16 %v555
    %v1276 = vunpack.c.l.b16 %v556
    %v1277 = vunpack.c.h.b16 %v556
    %v1278 = vunpack.c.l.b16 %v557
    %v1279 = vunpack.c.h.b16 %v557
    %v1280 = vunpack.c.l.b16 %v558
    %v1281 = vunpack.c.h.b16 %v558
    %v1282 = vunpack.c.l.b16 %v559
    %v1283 = vunpack.c.h.b16 %v559
    %v1284 = vunpack.c.l.b16 %v560
    %v1285 = vunpack.c.h.b16 %v560
    %v1286 = vunpack.c.l.b16 %v561
    %v1287 = vunpack.c.h.b16 %v561
    %v1288 = vunpack.c.l.b16 %v562
    %v1289 = vunpack.c.h.b16 %v562
    %v1290 = vunpack.c.l.b16 %v563
    %v1291 = vunpack.c.h.b16 %v563
    %v1292 = vunpack.c.l.b16 %v564
    %v1293 = vunpack.c.h.b16 %v564
    %v1294 = vunpack.c.l.b16 %v565
    %v1295 = vunpack.c.h.b16 %v565
    %v1296 = vunpack.c.l.b16 %v566
    %v1297 = vunpack.c.h.b16 %v566
    %v1298 = vunpack.c.l.b16 %v567
    %v1299 = vunpack.c.h.b16 %v567
    %v1300 = vunpack.c.l.b16 %v568
    %v1301 = vunpack.c.h.b16 %v568
    %v1302 = vunpack.c.l.b16 %v569
    %v1303 = vunpack.c.h.b16 %v569
    %v1304 = vunpack.c.l.b16 %v570
    %v1305 = vunpack.c.h.b16 %v570
    %v1306 = vunpack.c.l.b16 %v571
    %v1307 = vunpack.c.h.b16 %v571
    %v1308 = vunpack.c.l.b16 %v572
    %v1309 = vunpack.c.h.b16 %v572
    %v1310 = vunpack.c.l.b16 %v573
    %v1311 = vunpack.c.h.b16 %v573
    %v1312 = vunpack.c.l.b16 %v574
    %v1313 = vunpack.c.h.b16 %v574
    %v1314 = vunpack.c.l.b16 %v575
    %v1315 = vunpack.c.h.b16 %v575
    %v1316 = vunpack.c.l.b16 %v576
    %v1317 = vunpack.c.h.b16 %v576
    %v1318 = vunpack.c.l.b16 %v577
    %v1319 = vunpack.c.h.b16 %v577
    %v1320 = vunpack.c.l.b16 %v578
    %v1321 = vunpack.c.h.b16 %v578
    %v1322 = vunpack.c.l.b16 %v579
    %v1323 = vunpack.c.h.b16 %v579
    %v1324 = vunpack.c.l.b16 %v580
    %v1325 = vunpack.c.h.b16 %v580
    %v1326 = vunpack.c.l.b16 %v581
    %v1327 = vunpack.c.h.b16 %v581
    %v1328 = vunpack.c.l.b16 %v582
    %v1329 = vunpack.c.h.b16 %v582
    %v1330 = vunpack.c.l.b16 %v583
    %v1331 = vunpack.c.h.b16 %v583
    %v1332 = vunpack.c.l.b16 %v584
    %v1333 = vunpack.c.h.b16 %v584
    %v1334 = vunpack.c.l.b16 %v585
    %v1335 = vunpack.c.h.b16 %v585
    %v1336 = vunpack.c.l.b16 %v586
    %v1337 = vunpack.c.h.b16 %v586
    %v1338 = vunpack.c.l.b16 %v587
    %v1339 = vunpack.c.h.b16 %v587
    %v1340 = vunpack.c.l.b16 %v588
    %v1341 = vunpack.c.h.b16 %v588
    %v1342 = vunpack.c.l.b16 %v589
    %v1343 = vunpack.c.h.b16 %v589
    %v1344 = vunpack.c.l.b16 %v590
    %v1345 = vunpack.c.h.b16 %v590
    %v1346 = vunpack.c.l.b16 %v591
    %v1347 = vunpack.c.h.b16 %v591
    %v1348 = vunpack.c.l.b16 %v592
    %v1349 = vunpack.c.h.b16 %v592
    %v1350 = vunpack.c.l.b16 %v593
    %v1351 = vunpack.c.h.b16 %v593
    %v1352 = vunpack.c.l.b16 %v594
    %v1353 = vunpack.c.h.b16 %v594
    %v1354 = vunpack.c.l.b16 %v595
    %v1355 = vunpack.c.h.b16 %v595
    %v1356 = vunpack.c.l.b16 %v596
    %v1357 = vunpack.c.h.b16 %v596
    %v1358 = vunpack.c.l.b16 %v597
    %v1359 = vunpack.c.h.b16 %v597
    %v1360 = vunpack.c.l.b16 %v598
    %v1361 = vunpack.c.h.b16 %v598
    %v1362 = vunpack.c.l.b16 %v599
    %v1363 = vunpack.c.h.b16 %v599
    %v1364 = vunpack.c.l.b16 %v600
    %v1365 = vunpack.c.h.b16 %v600
    %v1366 = vunpack.c.l.b16 %v601
    %v1367 = vunpack.c.h.b16 %v601
    %v1368 = vunpack.c.l.b16 %v602
    %v1369 = vunpack.c.h.b16 %v602
    %v1370 = vunpack.c.l.b16 %v603
    %v1371 = vunpack.c.h.b16 %v603
    %v1372 = vunpack.c.l.b16 %v604
    %v1373 = vunpack.c.h.b16 %v604
    %v1374 = vunpack.c.l.b16 %v605
    %v1375 = vunpack.c.h.b16 %v605
    %v1376 = vunpack.c.l.b16 %v606
    %v1377 = vunpack.c.h.b16 %v606
    %v1378 = vunpack.c.l.b16 %v607
    %v1379 = vunpack.c.h.b16 %v607
    %v1380 = vunpack.c.l.b16 %v608
    %v1381 = vunpack.c.h.b16 %v608
    %v1382 = vunpack.c.l.b16 %v609
    %v1383 = vunpack.c.h.b16 %v609
    %v1384 = vunpack.c.l.b16 %v610
    %v1385 = vunpack.c.h.b16 %v610
    %v1386 = vunpack.c.l.b16 %v611
    %v1387 = vunpack.c.h.b16 %v611
    %v1388 = vunpack.c.l.b16 %v612
    %v1389 = vunpack.c.h.b16 %v612
    %v1390 = vunpack.c.l.b16 %v613
    %v1391 = vunpack.c.h.b16 %v613
    %v1392 = vpack.c.b16 %v884, %v880
    %v1393 = vpack.c.b16 %v885, %v881
    %v1394 = vpack.c.b16 %v886, %v882
    %v1395 = vpack.c.b16 %v887, %v883
    %v1396 = vpack.c.b16 %v892, %v888
    %v1397 = vpack.c.b16 %v893, %v889
    %v1398 = vpack.c.b16 %v894, %v890
    %v1399 = vpack.c.b16 %v895, %v891
    %v1400 = vpack.c.b16 %v900, %v896
    %v1401 = vpack.c.b16 %v901, %v897
    %v1402 = vpack.c.b16 %v902, %v898
    %v1403 = vpack.c.b16 %v903, %v899
    %v1404 = vpack.c.b16 %v908, %v904
    %v1405 = vpack.c.b16 %v909, %v905
    %v1406 = vpack.c.b16 %v910, %v906
    %v1407 = vpack.c.b16 %v911, %v907
    %v1408 = vpack.c.b16 %v916, %v912
    %v1409 = vpack.c.b16 %v917, %v913
    %v1410 = vpack.c.b16 %v918, %v914
    %v1411 = vpack.c.b16 %v919, %v915
    %v1412 = vpack.c.b16 %v924, %v920
    %v1413 = vpack.c.b16 %v925, %v921
    %v1414 = vpack.c.b16 %v926, %v922
    %v1415 = vpack.c.b16 %v927, %v923
    %v1416 = vpack.c.b16 %v932, %v928
    %v1417 = vpack.c.b16 %v933, %v929
    %v1418 = vpack.c.b16 %v934, %v930
    %v1419 = vpack.c.b16 %v935, %v931
    %v1420 = vpack.c.b16 %v940, %v936
    %v1421 = vpack.c.b16 %v941, %v937
    %v1422 = vpack.c.b16 %v942, %v938
    %v1423 = vpack.c.b16 %v943, %v939
    %v1424 = vpack.c.b16 %v948, %v944
    %v1425 = vpack.c.b16 %v949, %v945
    %v1426 = vpack.c.b16 %v950, %v946
    %v1427 = vpack.c.b16 %v951, %v947
    %v1428 = vpack.c.b16 %v956, %v952
    %v1429 = vpack.c.b16 %v957, %v953
    %v1430 = vpack.c.b16 %v958, %v954
    %v1431 = vpack.c.b16 %v959, %v955
    %v1432 = vpack.c.b16 %v964, %v960
    %v1433 = vpack.c.b16 %v965, %v961
    %v1434 = vpack.c.b16 %v966, %v962
    %v1435 = vpack.c.b16 %v967, %v963
    %v1436 = vpack.c.b16 %v972, %v968
    %v1437 = vpack.c.b16 %v973, %v969
    %v1438 = vpack.c.b16 %v974, %v970
    %v1439 = vpack.c.b16 %v975, %v971
    %v1440 = vpack.c.b16 %v980, %v976
    %v1441 = vpack.c.b16 %v981, %v977
    %v1442 = vpack.c.b16 %v982, %v978
    %v1443 = vpack.c.b16 %v983, %v979
    %v1444 = vpack.c.b16 %v988, %v984
    %v1445 = vpack.c.b16 %v989, %v985
    %v1446 = vpack.c.b16 %v990, %v986
    %v1447 = vpack.c.b16 %v991, %v987
    %v1448 = vpack.c.b16 %v996, %v992
    %v1449 = vpack.c.b16 %v997, %v993
    %v1450 = vpack.c.b16 %v998, %v994
    %v1451 = vpack.c.b16 %v999, %v995
    %v1452 = vpack.c.b16 %v1004, %v1000
    %v1453 = vpack.c.b16 %v1005, %v1001
    %v1454 = vpack.c.b16 %v1006, %v1002
    %v1455 = vpack.c.b16 %v1007, %v1003
    %v1456 = vpack.c.b16 %v1012, %v1008
    %v1457 = vpack.c.b16 %v1013, %v1009
    %v1458 = vpack.c.b16 %v1014, %v1010
    %v1459 = vpack.c.b16 %v1015, %v1011
    %v1460 = vpack.c.b16 %v1020, %v1016
    %v1461 = vpack.c.b16 %v1021, %v1017
    %v1462 = vpack.c.b16 %v1022, %v1018
    %v1463 = vpack.c.b16 %v1023, %v1019
    %v1464 = vpack.c.b16 %v1028, %v1024
    %v1465 = vpack.c.b16 %v1029, %v1025
    %v1466 = vpack.c.b16 %v1030, %v1026
    %v1467 = vpack.c.b16 %v1031, %v1027
    %v1468 = vpack.c.b16 %v1036, %v1032
    %v1469 = vpack.c.b16 %v1037, %v1033
    %v1470 = vpack.c.b16 %v1038, %v1034
    %v1471 = vpack.c.b16 %v1039, %v1035
    %v1472 = vpack.c.b16 %v1044, %v1040
    %v1473 = vpack.c.b16 %v1045, %v1041
    %v1474 = vpack.c.b16 %v1046, %v1042
    %v1475 = vpack.c.b16 %v1047, %v1043
    %v1476 = vpack.c.b16 %v1052, %v1048
    %v1477 = vpack.c.b16 %v1053, %v1049
    %v1478 = vpack.c.b16 %v1054, %v1050
    %v1479 = vpack.c.b16 %v1055, %v1051
    %v1480 = vpack.c.b16 %v1060, %v1056
    %v1481 = vpack.c.b16 %v1061, %v1057
    %v1482 = vpack.c.b16 %v1062, %v1058
    %v1483 = vpack.c.b16 %v1063, %v1059
    %v1484 = vpack.c.b16 %v1068, %v1064
    %v1485 = vpack.c.b16 %v1069, %v1065
    %v1486 = vpack.c.b16 %v1070, %v1066
    %v1487 = vpack.c.b16 %v1071, %v1067
    %v1488 = vpack.c.b16 %v1076, %v1072
    %v1489 = vpack.c.b16 %v1077, %v1073
    %v1490 = vpack.c.b16 %v1078, %v1074
    %v1491 = vpack.c.b16 %v1079, %v1075
    %v1492 = vpack.c.b16 %v1084, %v1080
    %v1493 = vpack.c.b16 %v1085, %v1081
    %v1494 = vpack.c.b16 %v1086, %v1082
    %v1495 = vpack.c.b16 %v1087, %v1083
    %v1496 = vpack.c.b16 %v1092, %v1088
    %v1497 = vpack.c.b16 %v1093, %v1089
    %v1498 = vpack.c.b16 %v1094, %v1090
    %v1499 = vpack.c.b16 %v1095, %v1091
    %v1500 = vpack.c.b16 %v1100, %v1096
    %v1501 = vpack.c.b16 %v1101, %v1097
    %v1502 = vpack.c.b16 %v1102, %v1098
    %v1503 = vpack.c.b16 %v1103, %v1099
    %v1504 = vpack.c.b16 %v1108, %v1104
    %v1505 = vpack.c.b16 %v1109, %v1105
    %v1506 = vpack.c.b16 %v1110, %v1106
    %v1507 = vpack.c.b16 %v1111, %v1107
    %v1508 = vpack.c.b16 %v1116, %v1112
    %v1509 = vpack.c.b16 %v1117, %v1113
    %v1510 = vpack.c.b16 %v1118, %v1114
    %v1511 = vpack.c.b16 %v1119, %v1115
    %v1512 = vpack.c.b16 %v1124, %v1120
    %v1513 = vpack.c.b16 %v1125, %v1121
    %v1514 = vpack.c.b16 %v1126, %v1122
    %v1515 = vpack.c.b16 %v1127, %v1123
    %v1516 = vpack.c.b16 %v1132, %v1128
    %v1517 = vpack.c.b16 %v1133, %v1129
    %v1518 = vpack.c.b16 %v1134, %v1130
    %v1519 = vpack.c.b16 %v1135, %v1131
    %v1520 = vpack.c.b16 %v1140, %v1136
    %v1521 = vpack.c.b16 %v1141, %v1137
    %v1522 = vpack.c.b16 %v1142, %v1138
    %v1523 = vpack.c.b16 %v1143, %v1139
    %v1524 = vpack.c.b16 %v1148, %v1144
    %v1525 = vpack.c.b16 %v1149, %v1145
    %v1526 = vpack.c.b16 %v1150, %v1146
    %v1527 = vpack.c.b16 %v1151, %v1147
    %v1528 = vpack.c.b16 %v1156, %v1152
    %v1529 = vpack.c.b16 %v1157, %v1153
    %v1530 = vpack.c.b16 %v1158, %v1154
    %v1531 = vpack.c.b16 %v1159, %v1155
    %v1532 = vpack.c.b16 %v1164, %v1160
    %v1533 = vpack.c.b16 %v1165, %v1161
    %v1534 = vpack.c.b16 %v1166, %v1162
    %v1535 = vpack.c.b16 %v1167, %v1163
    %v1536 = vpack.c.b16 %v1172, %v1168
    %v1537 = vpack.c.b16 %v1173, %v1169
    %v1538 = vpack.c.b16 %v1174, %v1170
    %v1539 = vpack.c.b16 %v1175, %v1171
    %v1540 = vpack.c.b16 %v1180, %v1176
    %v1541 = vpack.c.b16 %v1181, %v1177
    %v1542 = vpack.c.b16 %v1182, %v1178
    %v1543 = vpack.c.b16 %v1183, %v1179
    %v1544 = vpack.c.b16 %v1188, %v1184
    %v1545 = vpack.c.b16 %v1189, %v1185
    %v1546 = vpack.c.b16 %v1190, %v1186
    %v1547 = vpack.c.b16 %v1191, %v1187
    %v1548 = vpack.c.b16 %v1196, %v1192
    %v1549 = vpack.c.b16 %v1197, %v1193
    %v1550 = vpack.c.b16 %v1198, %v1194
    %v1551 = vpack.c.b16 %v1199, %v1195
    %v1552 = vpack.c.b16 %v1204, %v1200
    %v1553 = vpack.c.b16 %v1205, %v1201
    %v1554 = vpack.c.b16 %v1206, %v1202
    %v1555 = vpack.c.b16 %v1207, %v1203
    %v1556 = vpack.c.b16 %v1212, %v1208
    %v1557 = vpack.c.b16 %v1213, %v1209
    %v1558 = vpack.c.b16 %v1214, %v1210
    %v1559 = vpack.c.b16 %v1215, %v1211
    %v1560 = vpack.c.b16 %v1220, %v1216
    %v1561 = vpack.c.b16 %v1221, %v1217
    %v1562 = vpack.c.b16 %v1222, %v1218
    %v1563 = vpack.c.b16 %v1223, %v1219
    %v1564 = vpack.c.b16 %v1228, %v1224
    %v1565 = vpack.c.b16 %v1229, %v1225
    %v1566 = vpack.c.b16 %v1230, %v1226
    %v1567 = vpack.c.b16 %v1231, %v1227
    %v1568 = vpack.c.b16 %v1236, %v1232
    %v1569 = vpack.c.b16 %v1237, %v1233
    %v1570 = vpack.c.b16 %v1238, %v1234
    %v1571 = vpack.c.b16 %v1239, %v1235
    %v1572 = vpack.c.b16 %v1244, %v1240
    %v1573 = vpack.c.b16 %v1245, %v1241
    %v1574 = vpack.c.b16 %v1246, %v1242
    %v1575 = vpack.c.b16 %v1247, %v1243
    %v1576 = vpack.c.b16 %v1252, %v1248
    %v1577 = vpack.c.b16 %v1253, %v1249
    %v1578 = vpack.c.b16 %v1254, %v1250
    %v1579 = vpack.c.b16 %v1255, %v1251
    %v1580 = vpack.c.b16 %v1260, %v1256
    %v1581 = vpack.c.b16 %v1261, %v1257
    %v1582 = vpack.c.b16 %v1262, %v1258
    %v1583 = vpack.c.b16 %v1263, %v1259
    %v1584 = vpack.c.b16 %v1268, %v1264
    %v1585 = vpack.c.b16 %v1269, %v1265
    %v1586 = vpack.c.b16 %v1270, %v1266
    %v1587 = vpack.c.b16 %v1271, %v1267
    %v1588 = vpack.c.b16 %v1276, %v1272
    %v1589 = vpack.c.b16 %v1277, %v1273
    %v1590 = vpack.c.b16 %v1278, %v1274
    %v1591 = vpack.c.b16 %v1279, %v1275
    %v1592 = vpack.c.b16 %v1284, %v1280
    %v1593 = vpack.c.b16 %v1285, %v1281
    %v1594 = vpack.c.b16 %v1286, %v1282
    %v1595 = vpack.c.b16 %v1287, %v1283
    %v1596 = vpack.c.b16 %v1292, %v1288
    %v1597 = vpack.c.b16 %v1293, %v1289
    %v1598 = vpack.c.b16 %v1294, %v1290
    %v1599 = vpack.c.b16 %v1295, %v1291
    %v1600 = vpack.c.b16 %v1300, %v1296
    %v1601 = vpack.c.b16 %v1301, %v1297
    %v1602 = vpack.c.b16 %v1302, %v1298
    %v1603 = vpack.c.b16 %v1303, %v1299
    %v1604 = vpack.c.b16 %v1308, %v1304
    %v1605 = vpack.c.b16 %v1309, %v1305
    %v1606 = vpack.c.b16 %v1310, %v1306
    %v1607 = vpack.c.b16 %v1311, %v1307
    %v1608 = vpack.c.b16 %v1316, %v1312
    %v1609 = vpack.c.b16 %v1317, %v1313
    %v1610 = vpack.c.b16 %v1318, %v1314
    %v1611 = vpack.c.b16 %v1319, %v1315
    %v1612 = vpack.c.b16 %v1324, %v1320
    %v1613 = vpack.c.b16 %v1325, %v1321
    %v1614 = vpack.c.b16 %v1326, %v1322
    %v1615 = vpack.c.b16 %v1327, %v1323
    %v1616 = vpack.c.b16 %v1332, %v1328
    %v1617 = vpack.c.b16 %v1333, %v1329
    %v1618 = vpack.c.b16 %v1334, %v1330
    %v1619 = vpack.c.b16 %v1335, %v1331
    %v1620 = vpack.c.b16 %v1340, %v1336
    %v1621 = vpack.c.b16 %v1341, %v1337
    %v1622 = vpack.c.b16 %v1342, %v1338
    %v1623 = vpack.c.b16 %v1343, %v1339
    %v1624 = vpack.c.b16 %v1348, %v1344
    %v1625 = vpack.c.b16 %v1349, %v1345
    %v1626 = vpack.c.b16 %v1350, %v1346
    %v1627 = vpack.c.b16 %v1351, %v1347
    %v1628 = vpack.c.b16 %v1356, %v1352
    %v1629 = vpack.c.b16 %v1357, %v1353
    %v1630 = vpack.c.b16 %v1358, %v1354
    %v1631 = vpack.c.b16 %v1359, %v1355
    %v1632 = vpack.c.b16 %v1364, %v1360
    %v1633 = vpack.c.b16 %v1365, %v1361
    %v1634 = vpack.c.b16 %v1366, %v1362
    %v1635 = vpack.c.b16 %v1367, %v1363
    %v1636 = vpack.c.b16 %v1372, %v1368
    %v1637 = vpack.c.b16 %v1373, %v1369
    %v1638 = vpack.c.b16 %v1374, %v1370
    %v1639 = vpack.c.b16 %v1375, %v1371
    %v1640 = vpack.c.b16 %v1380, %v1376
    %v1641 = vpack.c.b16 %v1381, %v1377
    %v1642 = vpack.c.b16 %v1382, %v1378
    %v1643 = vpack.c.b16 %v1383, %v1379
    %v1644 = vpack.c.b16 %v1388, %v1384
    %v1645 = vpack.c.b16 %v1389, %v1385
    %v1646 = vpack.c.b16 %v1390, %v1386
    %v1647 = vpack.c.b16 %v1391, %v1387
    %1904 = vmatpush.bf16.msra.mxu0 %v1420
    %1905 = vmatpush.bf16.msra.mxu0 %v1416
    %1906 = vmatpush.bf16.msra.mxu0 %v1412
    %1907 = vmatpush.bf16.msra.mxu0 %v1408
    %1908 = vmatpush.bf16.msra.mxu0 %v1404
    %1909 = vmatpush.bf16.msra.mxu0 %v1400
    %1910 = vmatpush.bf16.msra.mxu0 %v1396
    %1911 = vmatpush.bf16.msra.mxu0 %v1392
    %1912 = vmatmul.bf16.gmra.mxu0 %v350
    %v1913 = vpop.f32.mrf.mxu0
    %v1914 = vadd.f32 %v616, %v1913
    %v1915 = vpop.f32.mrf.mxu0
    %1916 = vdwg.mxu0
    %1917 = vmatpush.bf16.msra.mxu0 %v1452
    %1918 = vmatpush.bf16.msra.mxu0 %v1448
    %1919 = vmatpush.bf16.msra.mxu0 %v1444
    %1920 = vmatpush.bf16.msra.mxu0 %v1440
    %1921 = vmatpush.bf16.msra.mxu0 %v1436
    %1922 = vmatpush.bf16.msra.mxu0 %v1432
    %1923 = vmatpush.bf16.msra.mxu0 %v1428
    %1924 = vmatpush.bf16.msra.mxu0 %v1424
    %1925 = vmatmul.bf16.gmra.mxu0 %v351
    %v1926 = vpop.f32.mrf.mxu0
    %v1927 = vadd.f32 %v1914, %v1926
    %v1928 = vpop.f32.mrf.mxu0
    %1929 = vdwg.mxu0
    %1930 = vmatpush.bf16.msra.mxu0 %v1484
    %1931 = vmatpush.bf16.msra.mxu0 %v1480
    %1932 = vmatpush.bf16.msra.mxu0 %v1476
    %1933 = vmatpush.bf16.msra.mxu0 %v1472
    %1934 = vmatpush.bf16.msra.mxu0 %v1468
    %1935 = vmatpush.bf16.msra.mxu0 %v1464
    %1936 = vmatpush.bf16.msra.mxu0 %v1460
    %1937 = vmatpush.bf16.msra.mxu0 %v1456
    %1938 = vmatmul.bf16.gmra.mxu0 %v352
    %v1939 = vpop.f32.mrf.mxu0
    %v1940 = vadd.f32 %v1927, %v1939
    %v1941 = vpop.f32.mrf.mxu0
    %1942 = vdwg.mxu0
    %1943 = vmatpush.bf16.msra.mxu0 %v1516
    %1944 = vmatpush.bf16.msra.mxu0 %v1512
    %1945 = vmatpush.bf16.msra.mxu0 %v1508
    %1946 = vmatpush.bf16.msra.mxu0 %v1504
    %1947 = vmatpush.bf16.msra.mxu0 %v1500
    %1948 = vmatpush.bf16.msra.mxu0 %v1496
    %1949 = vmatpush.bf16.msra.mxu0 %v1492
    %1950 = vmatpush.bf16.msra.mxu0 %v1488
    %1951 = vmatmul.bf16.gmra.mxu0 %v353
    %v1952 = vpop.f32.mrf.mxu0
    %v1953 = vadd.f32 %v1940, %v1952
    %v1954 = vpop.f32.mrf.mxu0
    %1955 = vdwg.mxu0
    %1956 = vmatpush.bf16.msra.mxu0 %v1548
    %1957 = vmatpush.bf16.msra.mxu0 %v1544
    %1958 = vmatpush.bf16.msra.mxu0 %v1540
    %1959 = vmatpush.bf16.msra.mxu0 %v1536
    %1960 = vmatpush.bf16.msra.mxu0 %v1532
    %1961 = vmatpush.bf16.msra.mxu0 %v1528
    %1962 = vmatpush.bf16.msra.mxu0 %v1524
    %1963 = vmatpush.bf16.msra.mxu0 %v1520
    %1964 = vmatmul.bf16.gmra.mxu0 %v354
    %v1965 = vpop.f32.mrf.mxu0
    %v1966 = vadd.f32 %v1953, %v1965
    %v1967 = vpop.f32.mrf.mxu0
    %1968 = vdwg.mxu0
    %1969 = vmatpush.bf16.msra.mxu0 %v1580
    %1970 = vmatpush.bf16.msra.mxu0 %v1576
    %1971 = vmatpush.bf16.msra.mxu0 %v1572
    %1972 = vmatpush.bf16.msra.mxu0 %v1568
    %1973 = vmatpush.bf16.msra.mxu0 %v1564
    %1974 = vmatpush.bf16.msra.mxu0 %v1560
    %1975 = vmatpush.bf16.msra.mxu0 %v1556
    %1976 = vmatpush.bf16.msra.mxu0 %v1552
    %1977 = vmatmul.bf16.gmra.mxu0 %v355
    %v1978 = vpop.f32.mrf.mxu0
    %v1979 = vadd.f32 %v1966, %v1978
    %v1980 = vpop.f32.mrf.mxu0
    %1981 = vdwg.mxu0
    %1982 = vmatpush.bf16.msra.mxu0 %v1612
    %1983 = vmatpush.bf16.msra.mxu0 %v1608
    %1984 = vmatpush.bf16.msra.mxu0 %v1604
    %1985 = vmatpush.bf16.msra.mxu0 %v1600
    %1986 = vmatpush.bf16.msra.mxu0 %v1596
    %1987 = vmatpush.bf16.msra.mxu0 %v1592
    %1988 = vmatpush.bf16.msra.mxu0 %v1588
    %1989 = vmatpush.bf16.msra.mxu0 %v1584
    %1990 = vmatmul.bf16.gmra.mxu0 %v356
    %v1991 = vpop.f32.mrf.mxu0
    %v1992 = vadd.f32 %v1979, %v1991
    %v1993 = vpop.f32.mrf.mxu0
    %1994 = vdwg.mxu0
    %1995 = vmatpush.bf16.msra.mxu0 %v1644
    %1996 = vmatpush.bf16.msra.mxu0 %v1640
    %1997 = vmatpush.bf16.msra.mxu0 %v1636
    %1998 = vmatpush.bf16.msra.mxu0 %v1632
    %1999 = vmatpush.bf16.msra.mxu0 %v1628
    %2000 = vmatpush.bf16.msra.mxu0 %v1624
    %2001 = vmatpush.bf16.msra.mxu0 %v1620
    %2002 = vmatpush.bf16.msra.mxu0 %v1616
    %2003 = vmatmul.bf16.gmra.mxu0 %v357
    %v2004 = vpop.f32.mrf.mxu0
    %v2005 = vadd.f32 %v1992, %v2004
    %v2006 = vpop.f32.mrf.mxu0
    %2007 = vdwg.mxu0
    %2008 = vmatpush.bf16.msra.mxu0 %v1421
    %2009 = vmatpush.bf16.msra.mxu0 %v1417
    %2010 = vmatpush.bf16.msra.mxu0 %v1413
    %2011 = vmatpush.bf16.msra.mxu0 %v1409
    %2012 = vmatpush.bf16.msra.mxu0 %v1405
    %2013 = vmatpush.bf16.msra.mxu0 %v1401
    %2014 = vmatpush.bf16.msra.mxu0 %v1397
    %2015 = vmatpush.bf16.msra.mxu0 %v1393
    %2016 = vmatmul.bf16.gmra.mxu0 %v350
    %v2017 = vpop.f32.mrf.mxu0
    %v2018 = vadd.f32 %v617, %v2017
    %v2019 = vpop.f32.mrf.mxu0
    %2020 = vdwg.mxu0
    %2021 = vmatpush.bf16.msra.mxu0 %v1453
    %2022 = vmatpush.bf16.msra.mxu0 %v1449
    %2023 = vmatpush.bf16.msra.mxu0 %v1445
    %2024 = vmatpush.bf16.msra.mxu0 %v1441
    %2025 = vmatpush.bf16.msra.mxu0 %v1437
    %2026 = vmatpush.bf16.msra.mxu0 %v1433
    %2027 = vmatpush.bf16.msra.mxu0 %v1429
    %2028 = vmatpush.bf16.msra.mxu0 %v1425
    %2029 = vmatmul.bf16.gmra.mxu0 %v351
    %v2030 = vpop.f32.mrf.mxu0
    %v2031 = vadd.f32 %v2018, %v2030
    %v2032 = vpop.f32.mrf.mxu0
    %2033 = vdwg.mxu0
    %2034 = vmatpush.bf16.msra.mxu0 %v1485
    %2035 = vmatpush.bf16.msra.mxu0 %v1481
    %2036 = vmatpush.bf16.msra.mxu0 %v1477
    %2037 = vmatpush.bf16.msra.mxu0 %v1473
    %2038 = vmatpush.bf16.msra.mxu0 %v1469
    %2039 = vmatpush.bf16.msra.mxu0 %v1465
    %2040 = vmatpush.bf16.msra.mxu0 %v1461
    %2041 = vmatpush.bf16.msra.mxu0 %v1457
    %2042 = vmatmul.bf16.gmra.mxu0 %v352
    %v2043 = vpop.f32.mrf.mxu0
    %v2044 = vadd.f32 %v2031, %v2043
    %v2045 = vpop.f32.mrf.mxu0
    %2046 = vdwg.mxu0
    %2047 = vmatpush.bf16.msra.mxu0 %v1517
    %2048 = vmatpush.bf16.msra.mxu0 %v1513
    %2049 = vmatpush.bf16.msra.mxu0 %v1509
    %2050 = vmatpush.bf16.msra.mxu0 %v1505
    %2051 = vmatpush.bf16.msra.mxu0 %v1501
    %2052 = vmatpush.bf16.msra.mxu0 %v1497
    %2053 = vmatpush.bf16.msra.mxu0 %v1493
    %2054 = vmatpush.bf16.msra.mxu0 %v1489
    %2055 = vmatmul.bf16.gmra.mxu0 %v353
    %v2056 = vpop.f32.mrf.mxu0
    %v2057 = vadd.f32 %v2044, %v2056
    %v2058 = vpop.f32.mrf.mxu0
    %2059 = vdwg.mxu0
    %2060 = vmatpush.bf16.msra.mxu0 %v1549
    %2061 = vmatpush.bf16.msra.mxu0 %v1545
    %2062 = vmatpush.bf16.msra.mxu0 %v1541
    %2063 = vmatpush.bf16.msra.mxu0 %v1537
    %2064 = vmatpush.bf16.msra.mxu0 %v1533
    %2065 = vmatpush.bf16.msra.mxu0 %v1529
    %2066 = vmatpush.bf16.msra.mxu0 %v1525
    %2067 = vmatpush.bf16.msra.mxu0 %v1521
    %2068 = vmatmul.bf16.gmra.mxu0 %v354
    %v2069 = vpop.f32.mrf.mxu0
    %v2070 = vadd.f32 %v2057, %v2069
    %v2071 = vpop.f32.mrf.mxu0
    %2072 = vdwg.mxu0
    %2073 = vmatpush.bf16.msra.mxu0 %v1581
    %2074 = vmatpush.bf16.msra.mxu0 %v1577
    %2075 = vmatpush.bf16.msra.mxu0 %v1573
    %2076 = vmatpush.bf16.msra.mxu0 %v1569
    %2077 = vmatpush.bf16.msra.mxu0 %v1565
    %2078 = vmatpush.bf16.msra.mxu0 %v1561
    %2079 = vmatpush.bf16.msra.mxu0 %v1557
    %2080 = vmatpush.bf16.msra.mxu0 %v1553
    %2081 = vmatmul.bf16.gmra.mxu0 %v355
    %v2082 = vpop.f32.mrf.mxu0
    %v2083 = vadd.f32 %v2070, %v2082
    %v2084 = vpop.f32.mrf.mxu0
    %2085 = vdwg.mxu0
    %2086 = vmatpush.bf16.msra.mxu0 %v1613
    %2087 = vmatpush.bf16.msra.mxu0 %v1609
    %2088 = vmatpush.bf16.msra.mxu0 %v1605
    %2089 = vmatpush.bf16.msra.mxu0 %v1601
    %2090 = vmatpush.bf16.msra.mxu0 %v1597
    %2091 = vmatpush.bf16.msra.mxu0 %v1593
    %2092 = vmatpush.bf16.msra.mxu0 %v1589
    %2093 = vmatpush.bf16.msra.mxu0 %v1585
    %2094 = vmatmul.bf16.gmra.mxu0 %v356
    %v2095 = vpop.f32.mrf.mxu0
    %v2096 = vadd.f32 %v2083, %v2095
    %v2097 = vpop.f32.mrf.mxu0
    %2098 = vdwg.mxu0
    %2099 = vmatpush.bf16.msra.mxu0 %v1645
    %2100 = vmatpush.bf16.msra.mxu0 %v1641
    %2101 = vmatpush.bf16.msra.mxu0 %v1637
    %2102 = vmatpush.bf16.msra.mxu0 %v1633
    %2103 = vmatpush.bf16.msra.mxu0 %v1629
    %2104 = vmatpush.bf16.msra.mxu0 %v1625
    %2105 = vmatpush.bf16.msra.mxu0 %v1621
    %2106 = vmatpush.bf16.msra.mxu0 %v1617
    %2107 = vmatmul.bf16.gmra.mxu0 %v357
    %v2108 = vpop.f32.mrf.mxu0
    %v2109 = vadd.f32 %v2096, %v2108
    %v2110 = vpop.f32.mrf.mxu0
    %2111 = vdwg.mxu0
    %2112 = vmatpush.bf16.msra.mxu0 %v1422
    %2113 = vmatpush.bf16.msra.mxu0 %v1418
    %2114 = vmatpush.bf16.msra.mxu0 %v1414
    %2115 = vmatpush.bf16.msra.mxu0 %v1410
    %2116 = vmatpush.bf16.msra.mxu0 %v1406
    %2117 = vmatpush.bf16.msra.mxu0 %v1402
    %2118 = vmatpush.bf16.msra.mxu0 %v1398
    %2119 = vmatpush.bf16.msra.mxu0 %v1394
    %2120 = vmatmul.bf16.gmra.mxu0 %v350
    %v2121 = vpop.f32.mrf.mxu0
    %v2122 = vadd.f32 %v618, %v2121
    %v2123 = vpop.f32.mrf.mxu0
    %2124 = vdwg.mxu0
    %2125 = vmatpush.bf16.msra.mxu0 %v1454
    %2126 = vmatpush.bf16.msra.mxu0 %v1450
    %2127 = vmatpush.bf16.msra.mxu0 %v1446
    %2128 = vmatpush.bf16.msra.mxu0 %v1442
    %2129 = vmatpush.bf16.msra.mxu0 %v1438
    %2130 = vmatpush.bf16.msra.mxu0 %v1434
    %2131 = vmatpush.bf16.msra.mxu0 %v1430
    %2132 = vmatpush.bf16.msra.mxu0 %v1426
    %2133 = vmatmul.bf16.gmra.mxu0 %v351
    %v2134 = vpop.f32.mrf.mxu0
    %v2135 = vadd.f32 %v2122, %v2134
    %v2136 = vpop.f32.mrf.mxu0
    %2137 = vdwg.mxu0
    %2138 = vmatpush.bf16.msra.mxu0 %v1486
    %2139 = vmatpush.bf16.msra.mxu0 %v1482
    %2140 = vmatpush.bf16.msra.mxu0 %v1478
    %2141 = vmatpush.bf16.msra.mxu0 %v1474
    %2142 = vmatpush.bf16.msra.mxu0 %v1470
    %2143 = vmatpush.bf16.msra.mxu0 %v1466
    %2144 = vmatpush.bf16.msra.mxu0 %v1462
    %2145 = vmatpush.bf16.msra.mxu0 %v1458
    %2146 = vmatmul.bf16.gmra.mxu0 %v352
    %v2147 = vpop.f32.mrf.mxu0
    %v2148 = vadd.f32 %v2135, %v2147
    %v2149 = vpop.f32.mrf.mxu0
    %2150 = vdwg.mxu0
    %2151 = vmatpush.bf16.msra.mxu0 %v1518
    %2152 = vmatpush.bf16.msra.mxu0 %v1514
    %2153 = vmatpush.bf16.msra.mxu0 %v1510
    %2154 = vmatpush.bf16.msra.mxu0 %v1506
    %2155 = vmatpush.bf16.msra.mxu0 %v1502
    %2156 = vmatpush.bf16.msra.mxu0 %v1498
    %2157 = vmatpush.bf16.msra.mxu0 %v1494
    %2158 = vmatpush.bf16.msra.mxu0 %v1490
    %2159 = vmatmul.bf16.gmra.mxu0 %v353
    %v2160 = vpop.f32.mrf.mxu0
    %v2161 = vadd.f32 %v2148, %v2160
    %v2162 = vpop.f32.mrf.mxu0
    %2163 = vdwg.mxu0
    %2164 = vmatpush.bf16.msra.mxu0 %v1550
    %2165 = vmatpush.bf16.msra.mxu0 %v1546
    %2166 = vmatpush.bf16.msra.mxu0 %v1542
    %2167 = vmatpush.bf16.msra.mxu0 %v1538
    %2168 = vmatpush.bf16.msra.mxu0 %v1534
    %2169 = vmatpush.bf16.msra.mxu0 %v1530
    %2170 = vmatpush.bf16.msra.mxu0 %v1526
    %2171 = vmatpush.bf16.msra.mxu0 %v1522
    %2172 = vmatmul.bf16.gmra.mxu0 %v354
    %v2173 = vpop.f32.mrf.mxu0
    %v2174 = vadd.f32 %v2161, %v2173
    %v2175 = vpop.f32.mrf.mxu0
    %2176 = vdwg.mxu0
    %2177 = vmatpush.bf16.msra.mxu0 %v1582
    %2178 = vmatpush.bf16.msra.mxu0 %v1578
    %2179 = vmatpush.bf16.msra.mxu0 %v1574
    %2180 = vmatpush.bf16.msra.mxu0 %v1570
    %2181 = vmatpush.bf16.msra.mxu0 %v1566
    %2182 = vmatpush.bf16.msra.mxu0 %v1562
    %2183 = vmatpush.bf16.msra.mxu0 %v1558
    %2184 = vmatpush.bf16.msra.mxu0 %v1554
    %2185 = vmatmul.bf16.gmra.mxu0 %v355
    %v2186 = vpop.f32.mrf.mxu0
    %v2187 = vadd.f32 %v2174, %v2186
    %v2188 = vpop.f32.mrf.mxu0
    %2189 = vdwg.mxu0
    %2190 = vmatpush.bf16.msra.mxu0 %v1614
    %2191 = vmatpush.bf16.msra.mxu0 %v1610
    %2192 = vmatpush.bf16.msra.mxu0 %v1606
    %2193 = vmatpush.bf16.msra.mxu0 %v1602
    %2194 = vmatpush.bf16.msra.mxu0 %v1598
    %2195 = vmatpush.bf16.msra.mxu0 %v1594
    %2196 = vmatpush.bf16.msra.mxu0 %v1590
    %2197 = vmatpush.bf16.msra.mxu0 %v1586
    %2198 = vmatmul.bf16.gmra.mxu0 %v356
    %v2199 = vpop.f32.mrf.mxu0
    %v2200 = vadd.f32 %v2187, %v2199
    %v2201 = vpop.f32.mrf.mxu0
    %2202 = vdwg.mxu0
    %2203 = vmatpush.bf16.msra.mxu0 %v1646
    %2204 = vmatpush.bf16.msra.mxu0 %v1642
    %2205 = vmatpush.bf16.msra.mxu0 %v1638
    %2206 = vmatpush.bf16.msra.mxu0 %v1634
    %2207 = vmatpush.bf16.msra.mxu0 %v1630
    %2208 = vmatpush.bf16.msra.mxu0 %v1626
    %2209 = vmatpush.bf16.msra.mxu0 %v1622
    %2210 = vmatpush.bf16.msra.mxu0 %v1618
    %2211 = vmatmul.bf16.gmra.mxu0 %v357
    %v2212 = vpop.f32.mrf.mxu0
    %v2213 = vadd.f32 %v2200, %v2212
    %v2214 = vpop.f32.mrf.mxu0
    %2215 = vdwg.mxu0
    %2216 = vmatpush.bf16.msra.mxu0 %v1423
    %2217 = vmatpush.bf16.msra.mxu0 %v1419
    %2218 = vmatpush.bf16.msra.mxu0 %v1415
    %2219 = vmatpush.bf16.msra.mxu0 %v1411
    %2220 = vmatpush.bf16.msra.mxu0 %v1407
    %2221 = vmatpush.bf16.msra.mxu0 %v1403
    %2222 = vmatpush.bf16.msra.mxu0 %v1399
    %2223 = vmatpush.bf16.msra.mxu0 %v1395
    %2224 = vmatmul.bf16.gmra.mxu0 %v350
    %v2225 = vpop.f32.mrf.mxu0
    %v2226 = vadd.f32 %v619, %v2225
    %v2227 = vpop.f32.mrf.mxu0
    %2228 = vdwg.mxu0
    %2229 = vmatpush.bf16.msra.mxu0 %v1455
    %2230 = vmatpush.bf16.msra.mxu0 %v1451
    %2231 = vmatpush.bf16.msra.mxu0 %v1447
    %2232 = vmatpush.bf16.msra.mxu0 %v1443
    %2233 = vmatpush.bf16.msra.mxu0 %v1439
    %2234 = vmatpush.bf16.msra.mxu0 %v1435
    %2235 = vmatpush.bf16.msra.mxu0 %v1431
    %2236 = vmatpush.bf16.msra.mxu0 %v1427
    %2237 = vmatmul.bf16.gmra.mxu0 %v351
    %v2238 = vpop.f32.mrf.mxu0
    %v2239 = vadd.f32 %v2226, %v2238
    %v2240 = vpop.f32.mrf.mxu0
    %2241 = vdwg.mxu0
    %2242 = vmatpush.bf16.msra.mxu0 %v1487
    %2243 = vmatpush.bf16.msra.mxu0 %v1483
    %2244 = vmatpush.bf16.msra.mxu0 %v1479
    %2245 = vmatpush.bf16.msra.mxu0 %v1475
    %2246 = vmatpush.bf16.msra.mxu0 %v1471
    %2247 = vmatpush.bf16.msra.mxu0 %v1467
    %2248 = vmatpush.bf16.msra.mxu0 %v1463
    %2249 = vmatpush.bf16.msra.mxu0 %v1459
    %2250 = vmatmul.bf16.gmra.mxu0 %v352
    %v2251 = vpop.f32.mrf.mxu0
    %v2252 = vadd.f32 %v2239, %v2251
    %v2253 = vpop.f32.mrf.mxu0
    %2254 = vdwg.mxu0
    %2255 = vmatpush.bf16.msra.mxu0 %v1519
    %2256 = vmatpush.bf16.msra.mxu0 %v1515
    %2257 = vmatpush.bf16.msra.mxu0 %v1511
    %2258 = vmatpush.bf16.msra.mxu0 %v1507
    %2259 = vmatpush.bf16.msra.mxu0 %v1503
    %2260 = vmatpush.bf16.msra.mxu0 %v1499
    %2261 = vmatpush.bf16.msra.mxu0 %v1495
    %2262 = vmatpush.bf16.msra.mxu0 %v1491
    %2263 = vmatmul.bf16.gmra.mxu0 %v353
    %v2264 = vpop.f32.mrf.mxu0
    %v2265 = vadd.f32 %v2252, %v2264
    %v2266 = vpop.f32.mrf.mxu0
    %2267 = vdwg.mxu0
    %2268 = vmatpush.bf16.msra.mxu0 %v1551
    %2269 = vmatpush.bf16.msra.mxu0 %v1547
    %2270 = vmatpush.bf16.msra.mxu0 %v1543
    %2271 = vmatpush.bf16.msra.mxu0 %v1539
    %2272 = vmatpush.bf16.msra.mxu0 %v1535
    %2273 = vmatpush.bf16.msra.mxu0 %v1531
    %2274 = vmatpush.bf16.msra.mxu0 %v1527
    %2275 = vmatpush.bf16.msra.mxu0 %v1523
    %2276 = vmatmul.bf16.gmra.mxu0 %v354
    %v2277 = vpop.f32.mrf.mxu0
    %v2278 = vadd.f32 %v2265, %v2277
    %v2279 = vpop.f32.mrf.mxu0
    %2280 = vdwg.mxu0
    %2281 = vmatpush.bf16.msra.mxu0 %v1583
    %2282 = vmatpush.bf16.msra.mxu0 %v1579
    %2283 = vmatpush.bf16.msra.mxu0 %v1575
    %2284 = vmatpush.bf16.msra.mxu0 %v1571
    %2285 = vmatpush.bf16.msra.mxu0 %v1567
    %2286 = vmatpush.bf16.msra.mxu0 %v1563
    %2287 = vmatpush.bf16.msra.mxu0 %v1559
    %2288 = vmatpush.bf16.msra.mxu0 %v1555
    %2289 = vmatmul.bf16.gmra.mxu0 %v355
    %v2290 = vpop.f32.mrf.mxu0
    %v2291 = vadd.f32 %v2278, %v2290
    %v2292 = vpop.f32.mrf.mxu0
    %2293 = vdwg.mxu0
    %2294 = vmatpush.bf16.msra.mxu0 %v1615
    %2295 = vmatpush.bf16.msra.mxu0 %v1611
    %2296 = vmatpush.bf16.msra.mxu0 %v1607
    %2297 = vmatpush.bf16.msra.mxu0 %v1603
    %2298 = vmatpush.bf16.msra.mxu0 %v1599
    %2299 = vmatpush.bf16.msra.mxu0 %v1595
    %2300 = vmatpush.bf16.msra.mxu0 %v1591
    %2301 = vmatpush.bf16.msra.mxu0 %v1587
    %2302 = vmatmul.bf16.gmra.mxu0 %v356
    %v2303 = vpop.f32.mrf.mxu0
    %v2304 = vadd.f32 %v2291, %v2303
    %v2305 = vpop.f32.mrf.mxu0
    %2306 = vdwg.mxu0
    %2307 = vmatpush.bf16.msra.mxu0 %v1647
    %2308 = vmatpush.bf16.msra.mxu0 %v1643
    %2309 = vmatpush.bf16.msra.mxu0 %v1639
    %2310 = vmatpush.bf16.msra.mxu0 %v1635
    %2311 = vmatpush.bf16.msra.mxu0 %v1631
    %2312 = vmatpush.bf16.msra.mxu0 %v1627
    %2313 = vmatpush.bf16.msra.mxu0 %v1623
    %2314 = vmatpush.bf16.msra.mxu0 %v1619
    %2315 = vmatmul.bf16.gmra.mxu0 %v357
    %v2316 = vpop.f32.mrf.mxu0
    %v2317 = vadd.f32 %v2304, %v2316
    %v2318 = vpop.f32.mrf.mxu0
    %2319 = vdwg.mxu0
    %vm2320 = vcmp.gt.f32.partialorder %v2005, 0.0
    %vm2321 = vcmp.gt.f32.partialorder %v2109, 0.0
    %vm2322 = vcmp.gt.f32.partialorder %v2213, 0.0
    %vm2323 = vcmp.gt.f32.partialorder %v2317, 0.0
    %v2324 = vmul.f32 %v2005, 0.2
    %v2325 = vmul.f32 %v2109, 0.2
    %v2326 = vmul.f32 %v2213, 0.2
    %v2327 = vmul.f32 %v2317, 0.2
    %v2328 = vsel %vm2320, %v2005, %v2324
    %v2329 = vsel %vm2321, %v2109, %v2325
    %v2330 = vsel %vm2322, %v2213, %v2326
    %v2331 = vsel %vm2323, %v2317, %v2327
    %v2332 = vpack.c.bf16 %v2328, %v2328
    %v2333 = vpack.c.bf16 %v2329, %v2329
    %v2334 = vpack.c.bf16 %v2330, %v2330
    %v2335 = vpack.c.bf16 %v2331, %v2331
    %v2336 = vld [vmem:[#allocation7] sm:$0xf]
    %v2337 = vld [vmem:[#allocation7 + $0x4] sm:$0xf]
    %v2338 = vld [vmem:[#allocation7 + $0x8] sm:$0xf]
    %v2339 = vld [vmem:[#allocation7 + $0xc] sm:$0xf]
    %v2340 = vld [vmem:[#allocation7 + $0x10] sm:$0xf]
    %v2341 = vld [vmem:[#allocation7 + $0x14] sm:$0xf]
    %v2342 = vld [vmem:[#allocation7 + $0x18] sm:$0xf]
    %v2343 = vld [vmem:[#allocation7 + $0x1c] sm:$0xf]
    %v2344 = vld [vmem:[#allocation7 + $0x20] sm:$0xf]
    %v2345 = vld [vmem:[#allocation7 + $0x24] sm:$0xf]
    %v2346 = vld [vmem:[#allocation7 + $0x28] sm:$0xf]
    %v2347 = vld [vmem:[#allocation7 + $0x2c] sm:$0xf]
    %v2348 = vld [vmem:[#allocation7 + $0x30] sm:$0xf]
    %v2349 = vld [vmem:[#allocation7 + $0x34] sm:$0xf]
    %v2350 = vld [vmem:[#allocation7 + $0x38] sm:$0xf]
    %v2351 = vld [vmem:[#allocation7 + $0x3c] sm:$0xf]
    %v2352 = vld [vmem:[#allocation7 + $0x40] sm:$0xf]
    %v2353 = vld [vmem:[#allocation7 + $0x44] sm:$0xf]
    %v2354 = vld [vmem:[#allocation7 + $0x48] sm:$0xf]
    %v2355 = vld [vmem:[#allocation7 + $0x4c] sm:$0xf]
    %v2356 = vld [vmem:[#allocation7 + $0x50] sm:$0xf]
    %v2357 = vld [vmem:[#allocation7 + $0x54] sm:$0xf]
    %v2358 = vld [vmem:[#allocation7 + $0x58] sm:$0xf]
    %v2359 = vld [vmem:[#allocation7 + $0x5c] sm:$0xf]
    %v2360 = vld [vmem:[#allocation7 + $0x60] sm:$0xf]
    %v2361 = vld [vmem:[#allocation7 + $0x64] sm:$0xf]
    %v2362 = vld [vmem:[#allocation7 + $0x68] sm:$0xf]
    %v2363 = vld [vmem:[#allocation7 + $0x6c] sm:$0xf]
    %v2364 = vld [vmem:[#allocation7 + $0x70] sm:$0xf]
    %v2365 = vld [vmem:[#allocation7 + $0x74] sm:$0xf]
    %v2366 = vld [vmem:[#allocation7 + $0x78] sm:$0xf]
    %v2367 = vld [vmem:[#allocation7 + $0x7c] sm:$0xf]
    %v2368 = vld [vmem:[#allocation7 + $0x80] sm:$0xf]
    %v2369 = vld [vmem:[#allocation7 + $0x84] sm:$0xf]
    %v2370 = vld [vmem:[#allocation7 + $0x88] sm:$0xf]
    %v2371 = vld [vmem:[#allocation7 + $0x8c] sm:$0xf]
    %v2372 = vld [vmem:[#allocation7 + $0x90] sm:$0xf]
    %v2373 = vld [vmem:[#allocation7 + $0x94] sm:$0xf]
    %v2374 = vld [vmem:[#allocation7 + $0x98] sm:$0xf]
    %v2375 = vld [vmem:[#allocation7 + $0x9c] sm:$0xf]
    %v2376 = vld [vmem:[#allocation7 + $0xa0] sm:$0xf]
    %v2377 = vld [vmem:[#allocation7 + $0xa4] sm:$0xf]
    %v2378 = vld [vmem:[#allocation7 + $0xa8] sm:$0xf]
    %v2379 = vld [vmem:[#allocation7 + $0xac] sm:$0xf]
    %v2380 = vld [vmem:[#allocation7 + $0xb0] sm:$0xf]
    %v2381 = vld [vmem:[#allocation7 + $0xb4] sm:$0xf]
    %v2382 = vld [vmem:[#allocation7 + $0xb8] sm:$0xf]
    %v2383 = vld [vmem:[#allocation7 + $0xbc] sm:$0xf]
    %v2384 = vld [vmem:[#allocation7 + $0xc0] sm:$0xf]
    %v2385 = vld [vmem:[#allocation7 + $0xc4] sm:$0xf]
    %v2386 = vld [vmem:[#allocation7 + $0xc8] sm:$0xf]
    %v2387 = vld [vmem:[#allocation7 + $0xcc] sm:$0xf]
    %v2388 = vld [vmem:[#allocation7 + $0xd0] sm:$0xf]
    %v2389 = vld [vmem:[#allocation7 + $0xd4] sm:$0xf]
    %v2390 = vld [vmem:[#allocation7 + $0xd8] sm:$0xf]
    %v2391 = vld [vmem:[#allocation7 + $0xdc] sm:$0xf]
    %v2392 = vld [vmem:[#allocation7 + $0xe0] sm:$0xf]
    %v2393 = vld [vmem:[#allocation7 + $0xe4] sm:$0xf]
    %v2394 = vld [vmem:[#allocation7 + $0xe8] sm:$0xf]
    %v2395 = vld [vmem:[#allocation7 + $0xec] sm:$0xf]
    %v2396 = vld [vmem:[#allocation7 + $0xf0] sm:$0xf]
    %v2397 = vld [vmem:[#allocation7 + $0xf4] sm:$0xf]
    %v2398 = vld [vmem:[#allocation7 + $0xf8] sm:$0xf]
    %v2399 = vld [vmem:[#allocation7 + $0xfc] sm:$0xf]
    %v2400 = vld [vmem:[%s6] sm:$0x1]
    %v2402 = vperm.slane %v2400, 0
    %v2468 = vunpack.c.l.b16 %v2336
    %v2469 = vunpack.c.l.b16 %v2337
    %v2470 = vunpack.c.l.b16 %v2338
    %v2471 = vunpack.c.l.b16 %v2339
    %v2472 = vunpack.c.l.b16 %v2340
    %v2473 = vunpack.c.l.b16 %v2341
    %v2474 = vunpack.c.l.b16 %v2342
    %v2475 = vunpack.c.l.b16 %v2343
    %v2476 = vunpack.c.l.b16 %v2344
    %v2477 = vunpack.c.l.b16 %v2345
    %v2478 = vunpack.c.l.b16 %v2346
    %v2479 = vunpack.c.l.b16 %v2347
    %v2480 = vunpack.c.l.b16 %v2348
    %v2481 = vunpack.c.l.b16 %v2349
    %v2482 = vunpack.c.l.b16 %v2350
    %v2483 = vunpack.c.l.b16 %v2351
    %v2484 = vunpack.c.l.b16 %v2352
    %v2485 = vunpack.c.l.b16 %v2353
    %v2486 = vunpack.c.l.b16 %v2354
    %v2487 = vunpack.c.l.b16 %v2355
    %v2488 = vunpack.c.l.b16 %v2356
    %v2489 = vunpack.c.l.b16 %v2357
    %v2490 = vunpack.c.l.b16 %v2358
    %v2491 = vunpack.c.l.b16 %v2359
    %v2492 = vunpack.c.l.b16 %v2360
    %v2493 = vunpack.c.l.b16 %v2361
    %v2494 = vunpack.c.l.b16 %v2362
    %v2495 = vunpack.c.l.b16 %v2363
    %v2496 = vunpack.c.l.b16 %v2364
    %v2497 = vunpack.c.l.b16 %v2365
    %v2498 = vunpack.c.l.b16 %v2366
    %v2499 = vunpack.c.l.b16 %v2367
    %v2500 = vunpack.c.l.b16 %v2368
    %v2501 = vunpack.c.l.b16 %v2369
    %v2502 = vunpack.c.l.b16 %v2370
    %v2503 = vunpack.c.l.b16 %v2371
    %v2504 = vunpack.c.l.b16 %v2372
    %v2505 = vunpack.c.l.b16 %v2373
    %v2506 = vunpack.c.l.b16 %v2374
    %v2507 = vunpack.c.l.b16 %v2375
    %v2508 = vunpack.c.l.b16 %v2376
    %v2509 = vunpack.c.l.b16 %v2377
    %v2510 = vunpack.c.l.b16 %v2378
    %v2511 = vunpack.c.l.b16 %v2379
    %v2512 = vunpack.c.l.b16 %v2380
    %v2513 = vunpack.c.l.b16 %v2381
    %v2514 = vunpack.c.l.b16 %v2382
    %v2515 = vunpack.c.l.b16 %v2383
    %v2516 = vunpack.c.l.b16 %v2384
    %v2517 = vunpack.c.l.b16 %v2385
    %v2518 = vunpack.c.l.b16 %v2386
    %v2519 = vunpack.c.l.b16 %v2387
    %v2520 = vunpack.c.l.b16 %v2388
    %v2521 = vunpack.c.l.b16 %v2389
    %v2522 = vunpack.c.l.b16 %v2390
    %v2523 = vunpack.c.l.b16 %v2391
    %v2524 = vunpack.c.l.b16 %v2392
    %v2525 = vunpack.c.l.b16 %v2393
    %v2526 = vunpack.c.l.b16 %v2394
    %v2527 = vunpack.c.l.b16 %v2395
    %v2528 = vunpack.c.l.b16 %v2396
    %v2529 = vunpack.c.l.b16 %v2397
    %v2530 = vunpack.c.l.b16 %v2398
    %v2531 = vunpack.c.l.b16 %v2399
    %v2532 = vpack.c.b16 %v2469, %v2468
    %v2533 = vpack.c.b16 %v2471, %v2470
    %v2534 = vpack.c.b16 %v2473, %v2472
    %v2535 = vpack.c.b16 %v2475, %v2474
    %v2536 = vpack.c.b16 %v2477, %v2476
    %v2537 = vpack.c.b16 %v2479, %v2478
    %v2538 = vpack.c.b16 %v2481, %v2480
    %v2539 = vpack.c.b16 %v2483, %v2482
    %v2540 = vpack.c.b16 %v2485, %v2484
    %v2541 = vpack.c.b16 %v2487, %v2486
    %v2542 = vpack.c.b16 %v2489, %v2488
    %v2543 = vpack.c.b16 %v2491, %v2490
    %v2544 = vpack.c.b16 %v2493, %v2492
    %v2545 = vpack.c.b16 %v2495, %v2494
    %v2546 = vpack.c.b16 %v2497, %v2496
    %v2547 = vpack.c.b16 %v2499, %v2498
    %v2548 = vpack.c.b16 %v2501, %v2500
    %v2549 = vpack.c.b16 %v2503, %v2502
    %v2550 = vpack.c.b16 %v2505, %v2504
    %v2551 = vpack.c.b16 %v2507, %v2506
    %v2552 = vpack.c.b16 %v2509, %v2508
    %v2553 = vpack.c.b16 %v2511, %v2510
    %v2554 = vpack.c.b16 %v2513, %v2512
    %v2555 = vpack.c.b16 %v2515, %v2514
    %v2556 = vpack.c.b16 %v2517, %v2516
    %v2557 = vpack.c.b16 %v2519, %v2518
    %v2558 = vpack.c.b16 %v2521, %v2520
    %v2559 = vpack.c.b16 %v2523, %v2522
    %v2560 = vpack.c.b16 %v2525, %v2524
    %v2561 = vpack.c.b16 %v2527, %v2526
    %v2562 = vpack.c.b16 %v2529, %v2528
    %v2563 = vpack.c.b16 %v2531, %v2530
    %2596 = vmatpush.bf16.msra.mxu0 %v2539
    %2597 = vmatpush.bf16.msra.mxu0 %v2538
    %2598 = vmatpush.bf16.msra.mxu0 %v2537
    %2599 = vmatpush.bf16.msra.mxu0 %v2536
    %2600 = vmatpush.bf16.msra.mxu0 %v2535
    %2601 = vmatpush.bf16.msra.mxu0 %v2534
    %2602 = vmatpush.bf16.msra.mxu0 %v2533
    %2603 = vmatpush.bf16.msra.mxu0 %v2532
    %2604 = vmatmul.bf16.gmra.mxu0 %v2332
    %v2605 = vpop.f32.mrf.mxu0
    %v2606 = vadd.f32 %v2402, %v2605
    %v2607 = vpop.f32.mrf.mxu0
    %2608 = vdwg.mxu0
    %2609 = vmatpush.bf16.msra.mxu0 %v2547
    %2610 = vmatpush.bf16.msra.mxu0 %v2546
    %2611 = vmatpush.bf16.msra.mxu0 %v2545
    %2612 = vmatpush.bf16.msra.mxu0 %v2544
    %2613 = vmatpush.bf16.msra.mxu0 %v2543
    %2614 = vmatpush.bf16.msra.mxu0 %v2542
    %2615 = vmatpush.bf16.msra.mxu0 %v2541
    %2616 = vmatpush.bf16.msra.mxu0 %v2540
    %2617 = vmatmul.bf16.gmra.mxu0 %v2333
    %v2618 = vpop.f32.mrf.mxu0
    %v2619 = vadd.f32 %v2606, %v2618
    %v2620 = vpop.f32.mrf.mxu0
    %2621 = vdwg.mxu0
    %2622 = vmatpush.bf16.msra.mxu0 %v2555
    %2623 = vmatpush.bf16.msra.mxu0 %v2554
    %2624 = vmatpush.bf16.msra.mxu0 %v2553
    %2625 = vmatpush.bf16.msra.mxu0 %v2552
    %2626 = vmatpush.bf16.msra.mxu0 %v2551
    %2627 = vmatpush.bf16.msra.mxu0 %v2550
    %2628 = vmatpush.bf16.msra.mxu0 %v2549
    %2629 = vmatpush.bf16.msra.mxu0 %v2548
    %2630 = vmatmul.bf16.gmra.mxu0 %v2334
    %v2631 = vpop.f32.mrf.mxu0
    %v2632 = vadd.f32 %v2619, %v2631
    %v2633 = vpop.f32.mrf.mxu0
    %2634 = vdwg.mxu0
    %2635 = vmatpush.bf16.msra.mxu0 %v2563
    %2636 = vmatpush.bf16.msra.mxu0 %v2562
    %2637 = vmatpush.bf16.msra.mxu0 %v2561
    %2638 = vmatpush.bf16.msra.mxu0 %v2560
    %2639 = vmatpush.bf16.msra.mxu0 %v2559
    %2640 = vmatpush.bf16.msra.mxu0 %v2558
    %2641 = vmatpush.bf16.msra.mxu0 %v2557
    %2642 = vmatpush.bf16.msra.mxu0 %v2556
    %2643 = vmatmul.bf16.gmra.mxu0 %v2335
    %v2644 = vpop.f32.mrf.mxu0
    %v2645 = vadd.f32 %v2632, %v2644
    %v2646 = vpop.f32.mrf.mxu0
    %2647 = vdwg.mxu0
    %vm2648 = vcmp.gt.f32.partialorder %v2645, 0.0
    %v2649 = vmul.f32 %v2645, 0.2
    %v2650 = vsel %vm2648, %v2645, %v2649
    %v2651 = vpack.c.bf16 %v2650, %v2650
    %v2652 = vld [vmem:[%s7] sm:$0xf]
    %v2653 = vld [vmem:[%s7 + $0x4] sm:$0xf]
    %v2654 = vld [vmem:[%s7 + $0x8] sm:$0xf]
    %v2655 = vld [vmem:[%s7 + $0xc] sm:$0xf]
    %v2656 = vld [vmem:[%s7 + $0x10] sm:$0xf]
    %v2657 = vld [vmem:[%s7 + $0x14] sm:$0xf]
    %v2658 = vld [vmem:[%s7 + $0x18] sm:$0xf]
    %v2659 = vld [vmem:[%s7 + $0x1c] sm:$0xf]
    %v2660 = vld [vmem:[%s7 + $0x20] sm:$0xf]
    %v2661 = vld [vmem:[%s7 + $0x24] sm:$0xf]
    %v2662 = vld [vmem:[%s7 + $0x28] sm:$0xf]
    %v2663 = vld [vmem:[%s7 + $0x2c] sm:$0xf]
    %v2664 = vld [vmem:[%s7 + $0x30] sm:$0xf]
    %v2665 = vld [vmem:[%s7 + $0x34] sm:$0xf]
    %v2666 = vld [vmem:[%s7 + $0x38] sm:$0xf]
    %v2667 = vld [vmem:[%s7 + $0x3c] sm:$0xf]
    %v2668 = vld [vmem:[%s8] sm:$0x1]
    %v2670 = vperm.slane %v2668, 0
    %v2688 = vunpack.c.l.b16 %v2652
    %v2689 = vunpack.c.l.b16 %v2653
    %v2690 = vunpack.c.l.b16 %v2654
    %v2691 = vunpack.c.l.b16 %v2655
    %v2692 = vunpack.c.l.b16 %v2656
    %v2693 = vunpack.c.l.b16 %v2657
    %v2694 = vunpack.c.l.b16 %v2658
    %v2695 = vunpack.c.l.b16 %v2659
    %v2696 = vunpack.c.l.b16 %v2660
    %v2697 = vunpack.c.l.b16 %v2661
    %v2698 = vunpack.c.l.b16 %v2662
    %v2699 = vunpack.c.l.b16 %v2663
    %v2700 = vunpack.c.l.b16 %v2664
    %v2701 = vunpack.c.l.b16 %v2665
    %v2702 = vunpack.c.l.b16 %v2666
    %v2703 = vunpack.c.l.b16 %v2667
    %v2704 = vpack.c.b16 %v2689, %v2688
    %v2705 = vpack.c.b16 %v2691, %v2690
    %v2706 = vpack.c.b16 %v2693, %v2692
    %v2707 = vpack.c.b16 %v2695, %v2694
    %v2708 = vpack.c.b16 %v2697, %v2696
    %v2709 = vpack.c.b16 %v2699, %v2698
    %v2710 = vpack.c.b16 %v2701, %v2700
    %v2711 = vpack.c.b16 %v2703, %v2702
    %2720 = vmatpush.bf16.msra.mxu0 %v2711
    %2721 = vmatpush.bf16.msra.mxu0 %v2710
    %2722 = vmatpush.bf16.msra.mxu0 %v2709
    %2723 = vmatpush.bf16.msra.mxu0 %v2708
    %2724 = vmatpush.bf16.msra.mxu0 %v2707
    %2725 = vmatpush.bf16.msra.mxu0 %v2706
    %2726 = vmatpush.bf16.msra.mxu0 %v2705
    %2727 = vmatpush.bf16.msra.mxu0 %v2704
    %2728 = vmatmul.bf16.gmra.mxu0 %v2651
    %v2729 = vpop.f32.mrf.mxu0
    %v2730 = vadd.f32 %v2670, %v2729
    %v2731 = vpop.f32.mrf.mxu0
    %2732 = vdwg.mxu0
    %vm2733 = vcmp.gt.f32.partialorder %v2730, 0.0
    %v2734 = vmul.f32 %v2730, 0.2
    %v2735 = vsel %vm2733, %v2730, %v2734
    %v2736 = vpack.c.bf16 %v2735, %v2735
    %v2737 = vld [vmem:[%s9] sm:$0xf]
    %v2738 = vld [vmem:[%s9 + $0x4] sm:$0xf]
    %v2739 = vld [vmem:[%s9 + $0x8] sm:$0xf]
    %v2740 = vld [vmem:[%s9 + $0xc] sm:$0xf]
    %v2741 = vld [vmem:[%s10] sm:$0x1]
    %v2743 = vperm.slane %v2741, 0
    %v2749 = vunpack.c.l.b16 %v2737
    %v2750 = vunpack.c.l.b16 %v2738
    %v2751 = vunpack.c.l.b16 %v2739
    %v2752 = vunpack.c.l.b16 %v2740
    %v2753 = vpack.c.b16 %v2750, %v2749
    %v2754 = vpack.c.b16 %v2752, %v2751
    %v2758 = vsel %vm218, %v2736, 0
    %2760 = vmatpush.bf16.msra.mxu0 0
    %2761 = vmatpush.bf16.msra.mxu0 0
    %2762 = vmatpush.bf16.msra.mxu0 0
    %2763 = vmatpush.bf16.msra.mxu0 0
    %2764 = vmatpush.bf16.msra.mxu0 0
    %2765 = vmatpush.bf16.msra.mxu0 0
    %2766 = vmatpush.bf16.msra.mxu0 %v2754
    %2767 = vmatpush.bf16.msra.mxu0 %v2753
    %2768 = vmatmul.bf16.gmra.mxu0 %v2758
    %v2769 = vpop.f32.mrf.mxu0
    %v2770 = vadd.f32 %v2743, %v2769
    %v2771 = vpop.f32.mrf.mxu0
    %2772 = vdwg.mxu0
    %vm2773 = vcmp.gt.f32.partialorder %v2770, 0.0
    %v2774 = vmul.f32 %v2770, 0.2
    %v2775 = vsel %vm2773, %v2770, %v2774
    %v2776 = vpack.c.bf16 %v2775, %v2775
    %v2777 = vld [vmem:[%s11] sm:$0xf]
    %v2778 = vld [vmem:[%s11 + $0x4] sm:$0xf]
    %v2779 = vld [vmem:[%s12] sm:$0x1]
    %v2781 = vperm.slane %v2779, 0
    %v2785 = vunpack.c.l.b16 %v2777
    %v2786 = vunpack.c.l.b16 %v2778
    %v2787 = vpack.c.b16 %v2786, %v2785
    %vm2789 = vcmask 130048
    %v2791 = vsel %vm2789, %v2776, 0
    %2793 = vmatpush.bf16.msra.mxu0 0
    %2794 = vmatpush.bf16.msra.mxu0 0
    %2795 = vmatpush.bf16.msra.mxu0 0
    %2796 = vmatpush.bf16.msra.mxu0 0
    %2797 = vmatpush.bf16.msra.mxu0 0
    %2798 = vmatpush.bf16.msra.mxu0 0
    %2799 = vmatpush.bf16.msra.mxu0 0
    %2800 = vmatpush.bf16.msra.mxu0 %v2787
    %2801 = vmatmul.bf16.gmra.mxu0 %v2791
    %v2802 = vpop.f32.mrf.mxu0
    %v2803 = vadd.f32 %v2781, %v2802
    %v2804 = vpop.f32.mrf.mxu0
    %2805 = vdwg.mxu0
    %vm2806 = vcmp.gt.f32.partialorder %v2803, 0.0
    %v2807 = vmul.f32 %v2803, 0.2
    %v2808 = vsel %vm2806, %v2803, %v2807
    %v2809 = vpack.c.bf16 %v2808, %v2808
    %v2810 = vld [vmem:[%s13] sm:$0xf]
    %v2811 = vld [vmem:[%s13 + $0x4] sm:$0xf]
    %v2812 = vld [vmem:[%s14] sm:$0xf]
    %v2813 = vld [vmem:[%s14 + $0x4] sm:$0xf]
    %v2814 = vld [vmem:[%s14 + $0x8] sm:$0xf]
    %v2815 = vld [vmem:[%s14 + $0xc] sm:$0xf]
    %v2816 = vld [vmem:[%s14 + $0x10] sm:$0xf]
    %v2817 = vld [vmem:[%s14 + $0x14] sm:$0xf]
    %v2818 = vld [vmem:[%s14 + $0x18] sm:$0xf]
    %v2819 = vld [vmem:[%s14 + $0x1c] sm:$0xf]
    %v2828 = vunpack.c.l.b16 %v2812
    %v2829 = vunpack.c.l.b16 %v2813
    %v2830 = vunpack.c.l.b16 %v2814
    %v2831 = vunpack.c.l.b16 %v2815
    %v2832 = vunpack.c.l.b16 %v2816
    %v2833 = vunpack.c.l.b16 %v2817
    %v2834 = vunpack.c.l.b16 %v2818
    %v2835 = vunpack.c.l.b16 %v2819
    %v2836 = vpack.c.b16 %v2829, %v2828
    %v2837 = vpack.c.b16 %v2831, %v2830
    %v2838 = vpack.c.b16 %v2833, %v2832
    %v2839 = vpack.c.b16 %v2835, %v2834
    %vm2844 = vcmask 523264
    %v2846 = vsel %vm2844, %v2809, 0
    %2848 = vmatpush.bf16.msra.mxu0 0
    %2849 = vmatpush.bf16.msra.mxu0 0
    %2850 = vmatpush.bf16.msra.mxu0 0
    %2851 = vmatpush.bf16.msra.mxu0 0
    %2852 = vmatpush.bf16.msra.mxu0 %v2839
    %2853 = vmatpush.bf16.msra.mxu0 %v2838
    %2854 = vmatpush.bf16.msra.mxu0 %v2837
    %2855 = vmatpush.bf16.msra.mxu0 %v2836
    %2856 = vmatmul.bf16.gmra.mxu0 %v2846
    %v2857 = vpop.f32.mrf.mxu0
    %v2858 = vadd.f32 0.0, %v2857
    %v2859 = vpop.f32.mrf.mxu0
    %2860 = vdwg.mxu0
    %v2863 = vunpack.c.l.b16 %v2810
    %v2864 = vunpack.c.l.b16 %v2811
    %v2865 = vpack.c.b16 %v2864, %v2863
    %2867 = vmatpush.bf16.msra.mxu0 0
    %2868 = vmatpush.bf16.msra.mxu0 0
    %2869 = vmatpush.bf16.msra.mxu0 0
    %2870 = vmatpush.bf16.msra.mxu0 0
    %2871 = vmatpush.bf16.msra.mxu0 0
    %2872 = vmatpush.bf16.msra.mxu0 0
    %2873 = vmatpush.bf16.msra.mxu0 0
    %2874 = vmatpush.bf16.msra.mxu0 %v2865
    %2875 = vmatmul.bf16.gmra.mxu0 %v2791
    %v2876 = vpop.f32.mrf.mxu0
    %v2877 = vadd.f32 %v2858, %v2876
    %v2878 = vpop.f32.mrf.mxu0
    %2879 = vdwg.mxu0
    %v2880 = vld [vmem:[%s15] sm:$0x1]
    %v2882 = vperm.slane %v2880, 0
    %v2884 = vadd.f32 %v2877, %v2882
    %2885 = vst [vmem:[#allocation8] sm:$0xff] %v2884
    // Predicated region
    $region78: #{tpu_custom_call.1} parent=1 // pred_check
      _
    $region79: #{tpu_custom_call.1} parent=1 // pred_check_branch
      %2887 = sbr.rel (0) target = $region81
    $region80: #{tpu_custom_call.1} parent=1 // pred_region
      %2889 = vsyncadd [#allocation4], 0
      %s2891 = sshll.u32 [#allocation8], 4
      %s2892 = int_to_ptr.vmem [resolvable:$true] %s2891
      %s2893 = sshll.u32 %s16, 4
      %s2894 = int_to_ptr.hbm [resolvable:$true] %s2893
      %2896 = dma.vmem_to_hbm [thread:$0]  %s2892, 128, %s2894, [#allocation4]
    $region81: #{tpu_custom_call.1} parent=1 // pred_fallthru
      _
    // Predicated region
    $region82: #{tpu_custom_call.1} parent=1 // pred_check
      _
    $region83: #{tpu_custom_call.1} parent=1 // pred_check_branch
      %2898 = sbr.rel (0) target = $region85
    $region84: #{tpu_custom_call.1} parent=1 // pred_region
      %2900 = dma.done [#allocation4], 128
    $region85: #{tpu_custom_call.1} parent=1 // pred_fallthru
      _
    %2901 = vsyncpa [#allocation3], 1
    %2902 = vsyncpa [#allocation6], 1
    %2903 = vsyncpa [#allocation4], 1

</llo_original>
